<compile_context>
chip_gen: v6e
topology: v6e:2x2x1
jax: 0.10.0
libtpu: 0.0.40
codegen_flags: <defaults>
</compile_context>

<pallas_src>
import jax
import jax.numpy as jnp
from jax.experimental import pallas as pl
from jax.experimental.pallas import tpu as pltpu


# ------------------------------ fused kernel ------------------------------- #

def asm_kernel(lc_ref, x_ref, gc_ref,
               wth_ref, bth_ref, wg_ref, bg_ref, wph_ref, bph_ref,
               wW_ref, bW_ref, bns_ref, bnb_ref,
               w1_ref, w2_ref,
               out_ref):
    """One batch element of ASM.forward.

    Row layout of lc/x/gc/out (window-pixel-major):
        row = k * HW4 + j,   k = 2*dh + dw in [0,4),  j = window index in [0,HW4)
    so MaxPool2d(2,2) of any pointwise-conv output is a max over the 4
    contiguous row blocks, and all other ops are row-permutation equivariant.

    lc_ref : (HW, C_lc)   x_ref : (HW, C)   gc_ref : (HW, C_gc)
    wth/wg/wph : (C, I), biases (1, I); wW : (I, C), bW/bns/bnb : (1, C)
    w1 : (C_all, C_r), w2 : (C_r, C_all)
    out_ref : (HW, C_all) with C_all = C_lc + C + C_gc
    """
    HW, C = x_ref.shape
    HW4 = HW // 4
    C_lc = lc_ref.shape[1]
    C_gc = gc_ref.shape[1]

    x = x_ref[...]

    # ---------------- NonLocalBlock ---------------- #
    # 1x1 convs as full-resolution matmuls (MXU).
    theta = jnp.dot(x, wth_ref[...], preferred_element_type=jnp.float32) + bth_ref[...]
    g_full = jnp.dot(x, wg_ref[...], preferred_element_type=jnp.float32) + bg_ref[...]
    phi_full = jnp.dot(x, wph_ref[...], preferred_element_type=jnp.float32) + bph_ref[...]

    # MaxPool2d(2,2) after the pointwise conv == max over the 4 row blocks.
    g_p = g_full[0:HW4]
    phi_p = phi_full[0:HW4]
    for k in range(1, 4):
        g_p = jnp.maximum(g_p, g_full[k * HW4:(k + 1) * HW4])
        phi_p = jnp.maximum(phi_p, phi_full[k * HW4:(k + 1) * HW4])

    # f = theta @ phi^T  -> (HW, HW4), softmax over pooled keys.
    f = jax.lax.dot_general(theta, phi_p, (((1,), (1,)), ((), ())),
                            preferred_element_type=jnp.float32)
    f = f - jnp.max(f, axis=-1, keepdims=True)
    e = jnp.exp(f)
    p_attn = e * pl.reciprocal(jnp.sum(e, axis=-1, keepdims=True), approx=True)

    # y = softmax(f) @ g  -> (HW, I)
    y = jnp.dot(p_attn, g_p, preferred_element_type=jnp.float32)

    # W(y): 1x1 conv + folded eval-mode BatchNorm, then residual.
    wy = jnp.dot(y, wW_ref[...], preferred_element_type=jnp.float32) + bW_ref[...]
    wy = wy * bns_ref[...] + bnb_ref[...]
    z = wy + x                                            # (HW, C)

    # ---------------- SELayer on concat([lc, z, gc], channel) ---------------- #
    # (concat is never materialized: means and scales are computed per part.)
    lc = lc_ref[...].astype(jnp.float32)
    gc = gc_ref[...].astype(jnp.float32)
    inv_hw = 1.0 / HW
    m_lc = jnp.sum(lc, axis=0, keepdims=True) * inv_hw    # (1, C_lc)
    m_z = jnp.sum(z, axis=0, keepdims=True) * inv_hw      # (1, C)
    m_gc = jnp.sum(gc, axis=0, keepdims=True) * inv_hw    # (1, C_gc)

    h = (jnp.dot(m_lc, w1_ref[0:C_lc, :], preferred_element_type=jnp.float32)
         + jnp.dot(m_z, w1_ref[C_lc:C_lc + C, :], preferred_element_type=jnp.float32)
         + jnp.dot(m_gc, w1_ref[C_lc + C:C_lc + C + C_gc, :],
                   preferred_element_type=jnp.float32))
    h = jnp.maximum(h, 0.0)                               # ReLU
    s = jnp.dot(h, w2_ref[...], preferred_element_type=jnp.float32)
    s = pl.reciprocal(1.0 + jnp.exp(-s), approx=True)     # Sigmoid (EUP)

    out_ref[:, 0:C_lc] = (lc * s[:, 0:C_lc]).astype(out_ref.dtype)
    out_ref[:, C_lc:C_lc + C] = (z * s[:, C_lc:C_lc + C]).astype(out_ref.dtype)
    out_ref[:, C_lc + C:C_lc + C + C_gc] = (
        gc * s[:, C_lc + C:C_lc + C + C_gc]).astype(out_ref.dtype)


# ------------------------------- layout glue -------------------------------- #

def _to_kmajor_flat(x_nchw):
    """NCHW -> (B, H*W, C) with window-pixel-major row order (k-major)."""
    B, C, H, W = x_nchw.shape
    x = x_nchw.reshape(B, C, H // 2, 2, W // 2, 2)          # (b,c,hh,dh,ww,dw)
    x = jnp.transpose(x, (0, 3, 5, 2, 4, 1))                # (b,dh,dw,hh,ww,c)
    return x.reshape(B, H * W, C)


def _from_kmajor_flat(x_flat, H, W):
    """Inverse of _to_kmajor_flat: (B, H*W, C) k-major rows -> NCHW."""
    B, HW, C = x_flat.shape
    x = x_flat.reshape(B, 2, 2, H // 2, W // 2, C)          # (b,dh,dw,hh,ww,c)
    x = jnp.transpose(x, (0, 5, 3, 1, 4, 2))                # (b,c,hh,dh,ww,dw)
    return x.reshape(B, C, H, W)


# --------------------------------- wrapper ---------------------------------- #

def asm_forward(lc, fuse, gc, params):
    """ASM.forward: fuse <- NonLocal(fuse); cat([lc, fuse, gc], C); SELayer."""
    B, C, H, W = fuse.shape
    assert H % 2 == 0 and W % 2 == 0
    C_lc = lc.shape[1]
    C_gc = gc.shape[1]
    C_all = C_lc + C + C_gc
    HW = H * W
    HW4 = HW // 4

    p = params["non_local"]
    I = p["wth"].shape[1]
    C_r = params["se_w1"].shape[1]

    lc_f = _to_kmajor_flat(lc)
    x_f = _to_kmajor_flat(fuse)
    gc_f = _to_kmajor_flat(gc)

    weights = (p["wth"], p["bth"], p["wg"], p["bg"], p["wph"], p["bph"],
               p["wW"], p["bW"], p["bn_scale"], p["bn_shift"],
               params["se_w1"], params["se_w2"])

    flops = B * (3 * 2 * HW * C * I          # theta / g / phi 1x1 convs
                 + 2 * 2 * HW * HW4 * I      # f and y attention matmuls
                 + 2 * HW * I * C            # W(y) 1x1 conv
                 + 2 * C_all * C_r           # SE fc1
                 + 2 * C_r * C_all)          # SE fc2
    transcendentals = B * (HW * HW4 + C_all)
    bytes_accessed = 4 * (int(lc_f.size) + int(x_f.size) + int(gc_f.size)
                          + B * HW * C_all
                          + sum(int(w.size) for w in weights))

    out_flat = pl.pallas_call(
        asm_kernel,
        out_shape=jax.ShapeDtypeStruct((B, HW, C_all), fuse.dtype),
        grid=(B,),
        in_specs=[
            pl.BlockSpec((None, HW, C_lc), lambda b: (b, 0, 0)),   # lc
            pl.BlockSpec((None, HW, C), lambda b: (b, 0, 0)),      # fuse (x)
            pl.BlockSpec((None, HW, C_gc), lambda b: (b, 0, 0)),   # gc
            pl.BlockSpec((C, I), lambda b: (0, 0)),                # wtheta
            pl.BlockSpec((1, I), lambda b: (0, 0)),                # btheta
            pl.BlockSpec((C, I), lambda b: (0, 0)),                # wg
            pl.BlockSpec((1, I), lambda b: (0, 0)),                # bg
            pl.BlockSpec((C, I), lambda b: (0, 0)),                # wphi
            pl.BlockSpec((1, I), lambda b: (0, 0)),                # bphi
            pl.BlockSpec((I, C), lambda b: (0, 0)),                # wW
            pl.BlockSpec((1, C), lambda b: (0, 0)),                # bW
            pl.BlockSpec((1, C), lambda b: (0, 0)),                # bn scale
            pl.BlockSpec((1, C), lambda b: (0, 0)),                # bn shift
            pl.BlockSpec((C_all, C_r), lambda b: (0, 0)),          # se_w1
            pl.BlockSpec((C_r, C_all), lambda b: (0, 0)),          # se_w2
        ],
        out_specs=pl.BlockSpec((None, HW, C_all), lambda b: (b, 0, 0)),
        compiler_params=pltpu.CompilerParams(dimension_semantics=("parallel",)),
        cost_estimate=pl.CostEstimate(flops=flops,
                                      transcendentals=transcendentals,
                                      bytes_accessed=bytes_accessed),
    )(lc_f, x_f, gc_f, *weights)

    return _from_kmajor_flat(out_flat, H, W)


# --------------------------- pure-JAX reference ------------------------------ #

def asm_reference(lc, fuse, gc, params):
    """Straightforward NCHW re-implementation of ASM.forward (eval mode)."""
    B, C, H, W = fuse.shape
    p = params["non_local"]

    def conv1x1(x, w, b):                                    # w: (Cin, Cout)
        return jnp.einsum('bchw,cd->bdhw', x, w) + b.reshape(1, -1, 1, 1)

    def maxpool2(t):
        Bt, Ct, Ht, Wt = t.shape
        return t.reshape(Bt, Ct, Ht // 2, 2, Wt // 2, 2).max(axis=(3, 5))

    x = fuse
    theta = conv1x1(x, p["wth"], p["bth"])                    # (B, I, H, W)
    g = maxpool2(conv1x1(x, p["wg"], p["bg"]))                # (B, I, H/2, W/2)
    phi = maxpool2(conv1x1(x, p["wph"], p["bph"]))

    I = theta.shape[1]
    theta_f = theta.reshape(B, I, -1).transpose(0, 2, 1)      # (B, HW, I)
    phi_f = phi.reshape(B, I, -1)                             # (B, I, HW4)
    g_f = g.reshape(B, I, -1).transpose(0, 2, 1)              # (B, HW4, I)

    f = jnp.einsum('bqi,bik->bqk', theta_f, phi_f)
    p_attn = jax.nn.softmax(f, axis=-1)
    y = jnp.einsum('bqk,bki->bqi', p_attn, g_f)               # (B, HW, I)
    y = y.transpose(0, 2, 1).reshape(B, I, H, W)

    wy = conv1x1(y, p["wW"], p["bW"])
    wy = wy * p["bn_scale"].reshape(1, -1, 1, 1) + p["bn_shift"].reshape(1, -1, 1, 1)
    z = wy + x

    cat = jnp.concatenate([lc, z, gc], axis=1)
    m = cat.mean(axis=(2, 3))                                  # (B, C_all)
    h = jnp.maximum(m @ params["se_w1"], 0.0)
    s = jax.nn.sigmoid(h @ params["se_w2"])                    # (B, C_all)
    return cat * s[:, :, None, None]


# ------------------------------ parameter init ------------------------------- #

def init_params(key, in_channels, all_channels, reduction=16):
    inter = max(in_channels // 2, 1)
    ks = jax.random.split(key, 12)

    def nrm(k, shape, scale=0.1):
        return scale * jax.random.normal(k, shape, dtype=jnp.float32)

    # eval-mode BatchNorm with running_mean=0, running_var=1 folded to scale/shift.
    # (PyTorch zero-inits gamma/beta -> identity block; use small random values
    #  here so the non-local path is exercised.)
    eps = 1e-5
    gamma = nrm(ks[8], (in_channels,))
    beta = nrm(ks[9], (in_channels,))
    running_mean = jnp.zeros((in_channels,), jnp.float32)
    running_var = jnp.ones((in_channels,), jnp.float32)
    bn_scale = gamma / jnp.sqrt(running_var + eps)
    bn_shift = beta - running_mean * bn_scale

    return {
        "non_local": {
            "wg":  nrm(ks[0], (in_channels, inter)),
            "bg":  nrm(ks[1], (1, inter)),
            "wth": nrm(ks[2], (in_channels, inter)),
            "bth": nrm(ks[3], (1, inter)),
            "wph": nrm(ks[4], (in_channels, inter)),
            "bph": nrm(ks[5], (1, inter)),
            "wW":  nrm(ks[6], (inter, in_channels)),
            "bW":  nrm(ks[7], (1, in_channels)),
            "bn_scale": bn_scale.reshape(1, in_channels),
            "bn_shift": bn_shift.reshape(1, in_channels),
        },
        "se_w1": nrm(ks[10], (all_channels, all_channels // reduction)),
        "se_w2": nrm(ks[11], (all_channels // reduction, all_channels)),
    }


# ----------------------------------- main ------------------------------------ #

if __name__ == "__main__":
    key = jax.random.PRNGKey(0)
    B, C_in, H, W = 2, 16, 8, 8
    C_lc, C_gc = 16, 16
    all_channels = C_lc + C_in + C_gc          # 48 -> SE hidden = 48 // 16 = 3

    k_lc, k_fuse, k_gc, k_p = jax.random.split(key, 4)
    lc = jax.random.normal(k_lc, (B, C_lc, H, W), dtype=jnp.float32)
    fuse = jax.random.normal(k_fuse, (B, C_in, H, W), dtype=jnp.float32)
    gc = jax.random.normal(k_gc, (B, C_gc, H, W), dtype=jnp.float32)

    params = init_params(k_p, C_in, all_channels)

    out = jax.block_until_ready(asm_forward(lc, fuse, gc, params))
    assert out.shape == (B, all_channels, H, W), out.shape
    assert bool(jnp.all(jnp.isfinite(out)))

    ref = jax.block_until_ready(asm_reference(lc, fuse, gc, params))
    max_err = float(jnp.max(jnp.abs(out - ref)))
    assert max_err < 5e-2, f"kernel vs reference max abs err {max_err}"

    print("KERNEL_OK")
</pallas_src>

<mosaic_0001>
module attributes {stable_mosaic.version = 11 : i64} {
  func.func @asm_kernel(%arg0: i32, %arg1: memref<1x64x16xf32, #tpu.memory_space<vmem>>, %arg2: memref<1x64x16xf32, #tpu.memory_space<vmem>>, %arg3: memref<1x64x16xf32, #tpu.memory_space<vmem>>, %arg4: memref<16x8xf32, #tpu.memory_space<vmem>>, %arg5: memref<1x8xf32, #tpu.memory_space<vmem>>, %arg6: memref<16x8xf32, #tpu.memory_space<vmem>>, %arg7: memref<1x8xf32, #tpu.memory_space<vmem>>, %arg8: memref<16x8xf32, #tpu.memory_space<vmem>>, %arg9: memref<1x8xf32, #tpu.memory_space<vmem>>, %arg10: memref<8x16xf32, #tpu.memory_space<vmem>>, %arg11: memref<1x16xf32, #tpu.memory_space<vmem>>, %arg12: memref<1x16xf32, #tpu.memory_space<vmem>>, %arg13: memref<1x16xf32, #tpu.memory_space<vmem>>, %arg14: memref<48x3xf32, #tpu.memory_space<vmem>>, %arg15: memref<3x48xf32, #tpu.memory_space<vmem>>, %arg16: memref<1x64x48xf32, #tpu.memory_space<vmem>>) attributes {dimension_semantics = [#tpu.dimension_semantics<parallel>], iteration_bounds = array<i64: 2>, scalar_prefetch = 0 : i64, scratch_operands = 0 : i64, tpu.core_type = #tpu.core_type<tc>, window_params = [{transform_indices = @transform_0, window_bounds = array<i64: 1, 64, 16>}, {transform_indices = @transform_1, window_bounds = array<i64: 1, 64, 16>}, {transform_indices = @transform_2, window_bounds = array<i64: 1, 64, 16>}, {pipeline_mode = #tpu.pipeline_mode<synchronous>, transform_indices = @transform_3, window_bounds = array<i64: 16, 8>}, {pipeline_mode = #tpu.pipeline_mode<synchronous>, transform_indices = @transform_4, window_bounds = array<i64: 1, 8>}, {pipeline_mode = #tpu.pipeline_mode<synchronous>, transform_indices = @transform_5, window_bounds = array<i64: 16, 8>}, {pipeline_mode = #tpu.pipeline_mode<synchronous>, transform_indices = @transform_6, window_bounds = array<i64: 1, 8>}, {pipeline_mode = #tpu.pipeline_mode<synchronous>, transform_indices = @transform_7, window_bounds = array<i64: 16, 8>}, {pipeline_mode = #tpu.pipeline_mode<synchronous>, transform_indices = @transform_8, window_bounds = array<i64: 1, 8>}, {pipeline_mode = #tpu.pipeline_mode<synchronous>, transform_indices = @transform_9, window_bounds = array<i64: 8, 16>}, {pipeline_mode = #tpu.pipeline_mode<synchronous>, transform_indices = @transform_10, window_bounds = array<i64: 1, 16>}, {pipeline_mode = #tpu.pipeline_mode<synchronous>, transform_indices = @transform_11, window_bounds = array<i64: 1, 16>}, {pipeline_mode = #tpu.pipeline_mode<synchronous>, transform_indices = @transform_12, window_bounds = array<i64: 1, 16>}, {pipeline_mode = #tpu.pipeline_mode<synchronous>, transform_indices = @transform_13, window_bounds = array<i64: 48, 3>}, {pipeline_mode = #tpu.pipeline_mode<synchronous>, transform_indices = @transform_14, window_bounds = array<i64: 3, 48>}, {transform_indices = @transform_15, window_bounds = array<i64: 1, 64, 48>}]} {
    %c0 = arith.constant 0 : index
    %c0_0 = arith.constant 0 : index
    %c0_1 = arith.constant 0 : index
    %0 = vector.load %arg2[%c0, %c0_0, %c0_1] : memref<1x64x16xf32, #tpu.memory_space<vmem>>, vector<1x64x16xf32>
    %1 = vector.shape_cast %0 : vector<1x64x16xf32> to vector<64x16xf32>
    %c0_2 = arith.constant 0 : index
    %c0_3 = arith.constant 0 : index
    %2 = vector.load %arg4[%c0_2, %c0_3] : memref<16x8xf32, #tpu.memory_space<vmem>>, vector<16x8xf32>
    %cst = arith.constant dense<0.000000e+00> : vector<64x8xf32>
    %3 = tpu.matmul %1, %2, %cst {dimension_numbers = #tpu.dot_dimension_numbers<[1], [0], [0], [1], [0, 0, 1, 1], [], []>} : vector<64x16xf32>, vector<16x8xf32>, vector<64x8xf32> -> vector<64x8xf32>
    %c0_4 = arith.constant 0 : index
    %c0_5 = arith.constant 0 : index
    %4 = vector.load %arg5[%c0_4, %c0_5] : memref<1x8xf32, #tpu.memory_space<vmem>>, vector<1x8xf32>
    %5 = vector.broadcast %4 : vector<1x8xf32> to vector<64x8xf32>
    %6 = arith.addf %3, %5 : vector<64x8xf32>
    %c0_6 = arith.constant 0 : index
    %c0_7 = arith.constant 0 : index
    %7 = vector.load %arg6[%c0_6, %c0_7] : memref<16x8xf32, #tpu.memory_space<vmem>>, vector<16x8xf32>
    %cst_8 = arith.constant dense<0.000000e+00> : vector<64x8xf32>
    %8 = tpu.matmul %1, %7, %cst_8 {dimension_numbers = #tpu.dot_dimension_numbers<[1], [0], [0], [1], [0, 0, 1, 1], [], []>} : vector<64x16xf32>, vector<16x8xf32>, vector<64x8xf32> -> vector<64x8xf32>
    %c0_9 = arith.constant 0 : index
    %c0_10 = arith.constant 0 : index
    %9 = vector.load %arg7[%c0_9, %c0_10] : memref<1x8xf32, #tpu.memory_space<vmem>>, vector<1x8xf32>
    %10 = vector.broadcast %9 : vector<1x8xf32> to vector<64x8xf32>
    %11 = arith.addf %8, %10 : vector<64x8xf32>
    %c0_11 = arith.constant 0 : index
    %c0_12 = arith.constant 0 : index
    %12 = vector.load %arg8[%c0_11, %c0_12] : memref<16x8xf32, #tpu.memory_space<vmem>>, vector<16x8xf32>
    %cst_13 = arith.constant dense<0.000000e+00> : vector<64x8xf32>
    %13 = tpu.matmul %1, %12, %cst_13 {dimension_numbers = #tpu.dot_dimension_numbers<[1], [0], [0], [1], [0, 0, 1, 1], [], []>} : vector<64x16xf32>, vector<16x8xf32>, vector<64x8xf32> -> vector<64x8xf32>
    %c0_14 = arith.constant 0 : index
    %c0_15 = arith.constant 0 : index
    %14 = vector.load %arg9[%c0_14, %c0_15] : memref<1x8xf32, #tpu.memory_space<vmem>>, vector<1x8xf32>
    %15 = vector.broadcast %14 : vector<1x8xf32> to vector<64x8xf32>
    %16 = arith.addf %13, %15 : vector<64x8xf32>
    %17 = vector.extract_strided_slice %11 {offsets = [0, 0], sizes = [16, 8], strides = [1, 1]} : vector<64x8xf32> to vector<16x8xf32>
    %18 = vector.extract_strided_slice %16 {offsets = [0, 0], sizes = [16, 8], strides = [1, 1]} : vector<64x8xf32> to vector<16x8xf32>
    %19 = vector.extract_strided_slice %11 {offsets = [16, 0], sizes = [16, 8], strides = [1, 1]} : vector<64x8xf32> to vector<16x8xf32>
    %20 = arith.maximumf %17, %19 : vector<16x8xf32>
    %21 = vector.extract_strided_slice %16 {offsets = [16, 0], sizes = [16, 8], strides = [1, 1]} : vector<64x8xf32> to vector<16x8xf32>
    %22 = arith.maximumf %18, %21 : vector<16x8xf32>
    %23 = vector.extract_strided_slice %11 {offsets = [32, 0], sizes = [16, 8], strides = [1, 1]} : vector<64x8xf32> to vector<16x8xf32>
    %24 = arith.maximumf %20, %23 : vector<16x8xf32>
    %25 = vector.extract_strided_slice %16 {offsets = [32, 0], sizes = [16, 8], strides = [1, 1]} : vector<64x8xf32> to vector<16x8xf32>
    %26 = arith.maximumf %22, %25 : vector<16x8xf32>
    %27 = vector.extract_strided_slice %11 {offsets = [48, 0], sizes = [16, 8], strides = [1, 1]} : vector<64x8xf32> to vector<16x8xf32>
    %28 = arith.maximumf %24, %27 : vector<16x8xf32>
    %29 = vector.extract_strided_slice %16 {offsets = [48, 0], sizes = [16, 8], strides = [1, 1]} : vector<64x8xf32> to vector<16x8xf32>
    %30 = arith.maximumf %26, %29 : vector<16x8xf32>
    %cst_16 = arith.constant dense<0.000000e+00> : vector<64x16xf32>
    %31 = tpu.matmul %6, %30, %cst_16 {dimension_numbers = #tpu.dot_dimension_numbers<[1], [1], [0], [0], [0, 0, 1, 0], [], []>} : vector<64x8xf32>, vector<16x8xf32>, vector<64x16xf32> -> vector<64x16xf32>
    %cst_17 = arith.constant dense<0xFF800000> : vector<64xf32>
    %32 = vector.multi_reduction <maximumf>, %31, %cst_17 [1] : vector<64x16xf32> to vector<64xf32>
    %33 = vector.shape_cast %32 : vector<64xf32> to vector<64x1xf32>
    %34 = vector.broadcast %33 : vector<64x1xf32> to vector<64x16xf32>
    %35 = arith.subf %31, %34 : vector<64x16xf32>
    %36 = math.exp %35 : vector<64x16xf32>
    %cst_18 = arith.constant dense<0.000000e+00> : vector<64xf32>
    %37 = vector.multi_reduction <add>, %36, %cst_18 [1] : vector<64x16xf32> to vector<64xf32>
    %38 = vector.shape_cast %37 : vector<64xf32> to vector<64x1xf32>
    %39 = tpu.reciprocal %38 {approx = true} : vector<64x1xf32> -> vector<64x1xf32>
    %40 = vector.broadcast %39 : vector<64x1xf32> to vector<64x16xf32>
    %41 = arith.mulf %36, %40 : vector<64x16xf32>
    %cst_19 = arith.constant dense<0.000000e+00> : vector<64x8xf32>
    %42 = tpu.matmul %41, %28, %cst_19 {dimension_numbers = #tpu.dot_dimension_numbers<[1], [0], [0], [1], [0, 0, 1, 1], [], []>} : vector<64x16xf32>, vector<16x8xf32>, vector<64x8xf32> -> vector<64x8xf32>
    %c0_20 = arith.constant 0 : index
    %c0_21 = arith.constant 0 : index
    %43 = vector.load %arg10[%c0_20, %c0_21] : memref<8x16xf32, #tpu.memory_space<vmem>>, vector<8x16xf32>
    %cst_22 = arith.constant dense<0.000000e+00> : vector<64x16xf32>
    %44 = tpu.matmul %42, %43, %cst_22 {dimension_numbers = #tpu.dot_dimension_numbers<[1], [0], [0], [1], [0, 0, 1, 1], [], []>} : vector<64x8xf32>, vector<8x16xf32>, vector<64x16xf32> -> vector<64x16xf32>
    %c0_23 = arith.constant 0 : index
    %c0_24 = arith.constant 0 : index
    %45 = vector.load %arg11[%c0_23, %c0_24] : memref<1x16xf32, #tpu.memory_space<vmem>>, vector<1x16xf32>
    %46 = vector.broadcast %45 : vector<1x16xf32> to vector<64x16xf32>
    %47 = arith.addf %44, %46 : vector<64x16xf32>
    %c0_25 = arith.constant 0 : index
    %c0_26 = arith.constant 0 : index
    %48 = vector.load %arg12[%c0_25, %c0_26] : memref<1x16xf32, #tpu.memory_space<vmem>>, vector<1x16xf32>
    %49 = vector.broadcast %48 : vector<1x16xf32> to vector<64x16xf32>
    %50 = arith.mulf %47, %49 : vector<64x16xf32>
    %c0_27 = arith.constant 0 : index
    %c0_28 = arith.constant 0 : index
    %51 = vector.load %arg13[%c0_27, %c0_28] : memref<1x16xf32, #tpu.memory_space<vmem>>, vector<1x16xf32>
    %52 = vector.broadcast %51 : vector<1x16xf32> to vector<64x16xf32>
    %53 = arith.addf %50, %52 : vector<64x16xf32>
    %54 = arith.addf %53, %1 : vector<64x16xf32>
    %c0_29 = arith.constant 0 : index
    %c0_30 = arith.constant 0 : index
    %c0_31 = arith.constant 0 : index
    %55 = vector.load %arg1[%c0_29, %c0_30, %c0_31] : memref<1x64x16xf32, #tpu.memory_space<vmem>>, vector<1x64x16xf32>
    %56 = vector.shape_cast %55 : vector<1x64x16xf32> to vector<64x16xf32>
    %c0_32 = arith.constant 0 : index
    %c0_33 = arith.constant 0 : index
    %c0_34 = arith.constant 0 : index
    %57 = vector.load %arg3[%c0_32, %c0_33, %c0_34] : memref<1x64x16xf32, #tpu.memory_space<vmem>>, vector<1x64x16xf32>
    %58 = vector.shape_cast %57 : vector<1x64x16xf32> to vector<64x16xf32>
    %cst_35 = arith.constant dense<0.000000e+00> : vector<16xf32>
    %59 = vector.multi_reduction <add>, %56, %cst_35 [0] : vector<64x16xf32> to vector<16xf32>
    %60 = vector.shape_cast %59 : vector<16xf32> to vector<1x16xf32>
    %cst_36 = arith.constant 1.562500e-02 : f32
    %61 = vector.broadcast %cst_36 : f32 to vector<1x16xf32>
    %62 = arith.mulf %60, %61 : vector<1x16xf32>
    %cst_37 = arith.constant dense<0.000000e+00> : vector<16xf32>
    %63 = vector.multi_reduction <add>, %54, %cst_37 [0] : vector<64x16xf32> to vector<16xf32>
    %64 = vector.shape_cast %63 : vector<16xf32> to vector<1x16xf32>
    %cst_38 = arith.constant 1.562500e-02 : f32
    %65 = vector.broadcast %cst_38 : f32 to vector<1x16xf32>
    %66 = arith.mulf %64, %65 : vector<1x16xf32>
    %cst_39 = arith.constant dense<0.000000e+00> : vector<16xf32>
    %67 = vector.multi_reduction <add>, %58, %cst_39 [0] : vector<64x16xf32> to vector<16xf32>
    %68 = vector.shape_cast %67 : vector<16xf32> to vector<1x16xf32>
    %cst_40 = arith.constant 1.562500e-02 : f32
    %69 = vector.broadcast %cst_40 : f32 to vector<1x16xf32>
    %70 = arith.mulf %68, %69 : vector<1x16xf32>
    %c0_41 = arith.constant 0 : index
    %c0_42 = arith.constant 0 : index
    %71 = vector.load %arg14[%c0_41, %c0_42] : memref<48x3xf32, #tpu.memory_space<vmem>>, vector<16x3xf32>
    %cst_43 = arith.constant dense<0.000000e+00> : vector<1x3xf32>
    %72 = tpu.matmul %62, %71, %cst_43 {dimension_numbers = #tpu.dot_dimension_numbers<[1], [0], [0], [1], [0, 0, 1, 1], [], []>} : vector<1x16xf32>, vector<16x3xf32>, vector<1x3xf32> -> vector<1x3xf32>
    %c16 = arith.constant 16 : index
    %c0_44 = arith.constant 0 : index
    %73 = vector.load %arg14[%c16, %c0_44] : memref<48x3xf32, #tpu.memory_space<vmem>>, vector<16x3xf32>
    %cst_45 = arith.constant dense<0.000000e+00> : vector<1x3xf32>
    %74 = tpu.matmul %66, %73, %cst_45 {dimension_numbers = #tpu.dot_dimension_numbers<[1], [0], [0], [1], [0, 0, 1, 1], [], []>} : vector<1x16xf32>, vector<16x3xf32>, vector<1x3xf32> -> vector<1x3xf32>
    %75 = arith.addf %72, %74 : vector<1x3xf32>
    %c32 = arith.constant 32 : index
    %c0_46 = arith.constant 0 : index
    %76 = vector.load %arg14[%c32, %c0_46] : memref<48x3xf32, #tpu.memory_space<vmem>>, vector<16x3xf32>
    %cst_47 = arith.constant dense<0.000000e+00> : vector<1x3xf32>
    %77 = tpu.matmul %70, %76, %cst_47 {dimension_numbers = #tpu.dot_dimension_numbers<[1], [0], [0], [1], [0, 0, 1, 1], [], []>} : vector<1x16xf32>, vector<16x3xf32>, vector<1x3xf32> -> vector<1x3xf32>
    %78 = arith.addf %75, %77 : vector<1x3xf32>
    %cst_48 = arith.constant 0.000000e+00 : f32
    %79 = vector.broadcast %cst_48 : f32 to vector<1x3xf32>
    %80 = arith.maximumf %78, %79 : vector<1x3xf32>
    %c0_49 = arith.constant 0 : index
    %c0_50 = arith.constant 0 : index
    %81 = vector.load %arg15[%c0_49, %c0_50] : memref<3x48xf32, #tpu.memory_space<vmem>>, vector<3x48xf32>
    %cst_51 = arith.constant dense<0.000000e+00> : vector<1x48xf32>
    %82 = tpu.matmul %80, %81, %cst_51 {dimension_numbers = #tpu.dot_dimension_numbers<[1], [0], [0], [1], [0, 0, 1, 1], [], []>} : vector<1x3xf32>, vector<3x48xf32>, vector<1x48xf32> -> vector<1x48xf32>
    %cst_52 = arith.constant 0.000000e+00 : f32
    %83 = vector.broadcast %cst_52 : f32 to vector<1x48xf32>
    %84 = arith.subf %83, %82 : vector<1x48xf32>
    %85 = math.exp %84 : vector<1x48xf32>
    %cst_53 = arith.constant 1.000000e+00 : f32
    %86 = vector.broadcast %cst_53 : f32 to vector<1x48xf32>
    %87 = arith.addf %86, %85 : vector<1x48xf32>
    %88 = tpu.reciprocal %87 {approx = true} : vector<1x48xf32> -> vector<1x48xf32>
    %89 = vector.extract_strided_slice %88 {offsets = [0, 0], sizes = [1, 16], strides = [1, 1]} : vector<1x48xf32> to vector<1x16xf32>
    %90 = vector.broadcast %89 : vector<1x16xf32> to vector<64x16xf32>
    %91 = arith.mulf %56, %90 : vector<64x16xf32>
    %c0_54 = arith.constant 0 : index
    %c0_55 = arith.constant 0 : index
    %c0_56 = arith.constant 0 : index
    %92 = vector.load %arg16[%c0_54, %c0_55, %c0_56] : memref<1x64x48xf32, #tpu.memory_space<vmem>>, vector<1x64x16xf32>
    %93 = vector.shape_cast %92 : vector<1x64x16xf32> to vector<64x16xf32>
    %94 = vector.shape_cast %91 : vector<64x16xf32> to vector<1x64x16xf32>
    tpu.vector_store %arg16[%c0_54, %c0_55, %c0_56], %94 {strides = array<i32>} : memref<1x64x48xf32, #tpu.memory_space<vmem>>, vector<1x64x16xf32>,
    %95 = vector.extract_strided_slice %88 {offsets = [0, 16], sizes = [1, 16], strides = [1, 1]} : vector<1x48xf32> to vector<1x16xf32>
    %96 = vector.broadcast %95 : vector<1x16xf32> to vector<64x16xf32>
    %97 = arith.mulf %54, %96 : vector<64x16xf32>
    %c0_57 = arith.constant 0 : index
    %c0_58 = arith.constant 0 : index
    %c16_59 = arith.constant 16 : index
    %98 = vector.load %arg16[%c0_57, %c0_58, %c16_59] : memref<1x64x48xf32, #tpu.memory_space<vmem>>, vector<1x64x16xf32>
    %99 = vector.shape_cast %98 : vector<1x64x16xf32> to vector<64x16xf32>
    %100 = vector.shape_cast %97 : vector<64x16xf32> to vector<1x64x16xf32>
    tpu.vector_store %arg16[%c0_57, %c0_58, %c16_59], %100 {strides = array<i32>} : memref<1x64x48xf32, #tpu.memory_space<vmem>>, vector<1x64x16xf32>,
    %101 = vector.extract_strided_slice %88 {offsets = [0, 32], sizes = [1, 16], strides = [1, 1]} : vector<1x48xf32> to vector<1x16xf32>
    %102 = vector.broadcast %101 : vector<1x16xf32> to vector<64x16xf32>
    %103 = arith.mulf %58, %102 : vector<64x16xf32>
    %c0_60 = arith.constant 0 : index
    %c0_61 = arith.constant 0 : index
    %c32_62 = arith.constant 32 : index
    %104 = vector.load %arg16[%c0_60, %c0_61, %c32_62] : memref<1x64x48xf32, #tpu.memory_space<vmem>>, vector<1x64x16xf32>
    %105 = vector.shape_cast %104 : vector<1x64x16xf32> to vector<64x16xf32>
    %106 = vector.shape_cast %103 : vector<64x16xf32> to vector<1x64x16xf32>
    tpu.vector_store %arg16[%c0_60, %c0_61, %c32_62], %106 {strides = array<i32>} : memref<1x64x48xf32, #tpu.memory_space<vmem>>, vector<1x64x16xf32>,
    return
  }
  func.func @transform_0(%arg0: i32) -> (i32, i32, i32) {
    %c0_i32 = arith.constant 0 : i32
    %c0_i32_0 = arith.constant 0 : i32
    %c0_i32_1 = arith.constant 0 : i32
    return %arg0, %c0_i32, %c0_i32_0 : i32, i32, i32
  }
  func.func @transform_1(%arg0: i32) -> (i32, i32, i32) {
    %c0_i32 = arith.constant 0 : i32
    %c0_i32_0 = arith.constant 0 : i32
    %c0_i32_1 = arith.constant 0 : i32
    return %arg0, %c0_i32, %c0_i32_0 : i32, i32, i32
  }
  func.func @transform_2(%arg0: i32) -> (i32, i32, i32) {
    %c0_i32 = arith.constant 0 : i32
    %c0_i32_0 = arith.constant 0 : i32
    %c0_i32_1 = arith.constant 0 : i32
    return %arg0, %c0_i32, %c0_i32_0 : i32, i32, i32
  }
  func.func @transform_3(%arg0: i32) -> (i32, i32) {
    %c0_i32 = arith.constant 0 : i32
    %c0_i32_0 = arith.constant 0 : i32
    %c0_i32_1 = arith.constant 0 : i32
    return %c0_i32, %c0_i32_0 : i32, i32
  }
  func.func @transform_4(%arg0: i32) -> (i32, i32) {
    %c0_i32 = arith.constant 0 : i32
    %c0_i32_0 = arith.constant 0 : i32
    %c0_i32_1 = arith.constant 0 : i32
    return %c0_i32, %c0_i32_0 : i32, i32
  }
  func.func @transform_5(%arg0: i32) -> (i32, i32) {
    %c0_i32 = arith.constant 0 : i32
    %c0_i32_0 = arith.constant 0 : i32
    %c0_i32_1 = arith.constant 0 : i32
    return %c0_i32, %c0_i32_0 : i32, i32
  }
  func.func @transform_6(%arg0: i32) -> (i32, i32) {
    %c0_i32 = arith.constant 0 : i32
    %c0_i32_0 = arith.constant 0 : i32
    %c0_i32_1 = arith.constant 0 : i32
    return %c0_i32, %c0_i32_0 : i32, i32
  }
  func.func @transform_7(%arg0: i32) -> (i32, i32) {
    %c0_i32 = arith.constant 0 : i32
    %c0_i32_0 = arith.constant 0 : i32
    %c0_i32_1 = arith.constant 0 : i32
    return %c0_i32, %c0_i32_0 : i32, i32
  }
  func.func @transform_8(%arg0: i32) -> (i32, i32) {
    %c0_i32 = arith.constant 0 : i32
    %c0_i32_0 = arith.constant 0 : i32
    %c0_i32_1 = arith.constant 0 : i32
    return %c0_i32, %c0_i32_0 : i32, i32
  }
  func.func @transform_9(%arg0: i32) -> (i32, i32) {
    %c0_i32 = arith.constant 0 : i32
    %c0_i32_0 = arith.constant 0 : i32
    %c0_i32_1 = arith.constant 0 : i32
    return %c0_i32, %c0_i32_0 : i32, i32
  }
  func.func @transform_10(%arg0: i32) -> (i32, i32) {
    %c0_i32 = arith.constant 0 : i32
    %c0_i32_0 = arith.constant 0 : i32
    %c0_i32_1 = arith.constant 0 : i32
    return %c0_i32, %c0_i32_0 : i32, i32
  }
  func.func @transform_11(%arg0: i32) -> (i32, i32) {
    %c0_i32 = arith.constant 0 : i32
    %c0_i32_0 = arith.constant 0 : i32
    %c0_i32_1 = arith.constant 0 : i32
    return %c0_i32, %c0_i32_0 : i32, i32
  }
  func.func @transform_12(%arg0: i32) -> (i32, i32) {
    %c0_i32 = arith.constant 0 : i32
    %c0_i32_0 = arith.constant 0 : i32
    %c0_i32_1 = arith.constant 0 : i32
    return %c0_i32, %c0_i32_0 : i32, i32
  }
  func.func @transform_13(%arg0: i32) -> (i32, i32) {
    %c0_i32 = arith.constant 0 : i32
    %c0_i32_0 = arith.constant 0 : i32
    %c0_i32_1 = arith.constant 0 : i32
    return %c0_i32, %c0_i32_0 : i32, i32
  }
  func.func @transform_14(%arg0: i32) -> (i32, i32) {
    %c0_i32 = arith.constant 0 : i32
    %c0_i32_0 = arith.constant 0 : i32
    %c0_i32_1 = arith.constant 0 : i32
    return %c0_i32, %c0_i32_0 : i32, i32
  }
  func.func @transform_15(%arg0: i32) -> (i32, i32, i32) {
    %c0_i32 = arith.constant 0 : i32
    %c0_i32_0 = arith.constant 0 : i32
    %c0_i32_1 = arith.constant 0 : i32
    return %arg0, %c0_i32, %c0_i32_0 : i32, i32, i32
  }
}

</mosaic_0001>

<llo_original>
// kernel: tpu_custom_call.1
$region0: #{tpu_custom_call.1}
  #allocation0 [shape = 'u32[]', space=smem, size = 0x4, offset = 0x4, fixed_abs, tag = 'smem constant byte address 0x4 - core index']
  #allocation1 [shape = 'u32[144,128]{1,0:T(1,128)}', space=vmem, size = 0x12000, scoped, tag = 'internal scratch']
  %s0 = inlined_call_operand.vmem [shape: f32[2,64,16], index: 0, kind: input, shape index: {}]
  %s1 = inlined_call_operand.vmem [shape: f32[2,64,16], index: 1, kind: input, shape index: {}]
  %s2 = inlined_call_operand.vmem [shape: f32[2,64,16], index: 2, kind: input, shape index: {}]
  %s3 = inlined_call_operand.vmem [shape: f32[16,8], index: 3, kind: input, shape index: {}]
  %s4 = inlined_call_operand.vmem [shape: f32[1,8], index: 4, kind: input, shape index: {}]
  %s5 = inlined_call_operand.vmem [shape: f32[16,8], index: 5, kind: input, shape index: {}]
  %s6 = inlined_call_operand.vmem [shape: f32[1,8], index: 6, kind: input, shape index: {}]
  %s7 = inlined_call_operand.vmem [shape: f32[16,8], index: 7, kind: input, shape index: {}]
  %s8 = inlined_call_operand.vmem [shape: f32[1,8], index: 8, kind: input, shape index: {}]
  %s9 = inlined_call_operand.vmem [shape: f32[8,16], index: 9, kind: input, shape index: {}]
  %s10 = inlined_call_operand.vmem [shape: f32[1,16], index: 10, kind: input, shape index: {}]
  %s11 = inlined_call_operand.vmem [shape: f32[1,16], index: 11, kind: input, shape index: {}]
  %s12 = inlined_call_operand.vmem [shape: f32[1,16], index: 12, kind: input, shape index: {}]
  %s13 = inlined_call_operand.vmem [shape: f32[48,3], index: 13, kind: input, shape index: {}]
  %s14 = inlined_call_operand.vmem [shape: f32[3,48], index: 14, kind: input, shape index: {}]
  %s15 = inlined_call_operand.vmem [shape: f32[2,64,48], index: 15, kind: output, shape index: {}]
  %s16 = sld [smem:[#allocation0]]
  $region93: #{tpu_custom_call.1} parent=0
    _
  %s18 = ssub.s32 1, %s16
  %s19 = scalar_select 0, %s18, %s16
  loop: start=0, step=1, limit=4
  $region2: #{tpu_custom_call.1} parent=0 // loop_pre_header
    _
  $region3: #{tpu_custom_call.1} parent=0 // loop_header
    %s21 = sphi 0, %s25
    %p22 = scmp.ge.s32.totalorder %s21, 4
    %s31 = sphi 0, %s33
    %s34 = sphi 0, %s31
    %s35 = sphi 0, %s34
    %s51 = sphi 0, %s35
    %s57 = sphi 0, %s59
    %s60 = sphi 0, %s57
    %s61 = sphi 0, %s60
    %s77 = sphi 0, %s61
    %s83 = sphi 0, %s85
    %s86 = sphi 0, %s83
    %s87 = sphi 0, %s86
    %s103 = sphi 0, %s87
    %s107 = sphi 0, %s107
    %s109 = sphi 0, %s107
    %s110 = sphi 0, %s109
    %s124 = sphi 0, %s110
    %s128 = sphi 0, %s128
    %s130 = sphi 0, %s128
    %s131 = sphi 0, %s130
    %s145 = sphi 0, %s131
    %s149 = sphi 0, %s149
    %s151 = sphi 0, %s149
    %s152 = sphi 0, %s151
    %s166 = sphi 0, %s152
    %s170 = sphi 0, %s170
    %s172 = sphi 0, %s170
    %s173 = sphi 0, %s172
    %s187 = sphi 0, %s173
    %s191 = sphi 0, %s191
    %s193 = sphi 0, %s191
    %s194 = sphi 0, %s193
    %s208 = sphi 0, %s194
    %s212 = sphi 0, %s212
    %s214 = sphi 0, %s212
    %s215 = sphi 0, %s214
    %s229 = sphi 0, %s215
    %s233 = sphi 0, %s233
    %s235 = sphi 0, %s233
    %s236 = sphi 0, %s235
    %s250 = sphi 0, %s236
    %s254 = sphi 0, %s254
    %s256 = sphi 0, %s254
    %s257 = sphi 0, %s256
    %s271 = sphi 0, %s257
    %s275 = sphi 0, %s275
    %s277 = sphi 0, %s275
    %s278 = sphi 0, %s277
    %s292 = sphi 0, %s278
    %s296 = sphi 0, %s296
    %s298 = sphi 0, %s296
    %s299 = sphi 0, %s298
    %s313 = sphi 0, %s299
    %s317 = sphi 0, %s317
    %s319 = sphi 0, %s317
    %s320 = sphi 0, %s319
    %s334 = sphi 0, %s320
    %s338 = sphi 0, %s338
    %s340 = sphi 0, %s338
    %s341 = sphi 0, %s340
    %s355 = sphi 0, %s341
    %s361 = sphi 0, %s363
    %s364 = sphi 0, %s361
    %s365 = sphi 0, %s364
    %s381 = sphi 0, %s365
  $region4: #{tpu_custom_call.1} parent=0 // loop_header_branch
    %24 = sbr.rel (%p22) target = $region8
  $region5: #{tpu_custom_call.1} parent=0 // loop_body
    %s26 = ssub.s32 %s21, 1
    %s27 = ssub.s32 %s21, 2
    %s28 = sadd.s32 %s21, 1
    %s29 = ssub.s32 %s21, %s28
    %p30 = scmp.eq.s32.totalorder %s29, 0
    %s32 = sadd.s32 %s31, 1
    %s33 = scalar_select %p30, %s31, %s32
    %p36 = pneg %p30
    %p37 = scmp.eq.s32.totalorder %s21, 1
    %p38 = por %p36, %p37
    %p39 = scmp.ne.s32.totalorder %s31, %s34
    %p40 = scmp.eq.s32.totalorder %s21, 0
    %p41 = por %p39, %p40
    %p42 = scmp.ne.s32.totalorder %s31, %s34
    %p43 = scmp.eq.s32.totalorder %s26, 1
    %p44 = por %p42, %p43
    %p45 = scmp.ne.s32.totalorder %s34, %s35
    %p46 = scmp.eq.s32.totalorder %s26, 0
    %p47 = por %p45, %p46
    %p48 = scmp.ne.s32.totalorder %s34, %s35
    %p49 = scmp.eq.s32.totalorder %s27, 1
    %p50 = por %p48, %p49
    %p52 = scmp.ne.s32.totalorder %s35, %s51
    %p53 = scmp.eq.s32.totalorder %s27, 0
    %p54 = por %p52, %p53
    %s55 = ssub.s32 %s21, %s28
    %p56 = scmp.eq.s32.totalorder %s55, 0
    %s58 = sadd.s32 %s57, 1
    %s59 = scalar_select %p56, %s57, %s58
    %p62 = pneg %p56
    %p63 = scmp.eq.s32.totalorder %s21, 1
    %p64 = por %p62, %p63
    %p65 = scmp.ne.s32.totalorder %s57, %s60
    %p66 = scmp.eq.s32.totalorder %s21, 0
    %p67 = por %p65, %p66
    %p68 = scmp.ne.s32.totalorder %s57, %s60
    %p69 = scmp.eq.s32.totalorder %s26, 1
    %p70 = por %p68, %p69
    %p71 = scmp.ne.s32.totalorder %s60, %s61
    %p72 = scmp.eq.s32.totalorder %s26, 0
    %p73 = por %p71, %p72
    %p74 = scmp.ne.s32.totalorder %s60, %s61
    %p75 = scmp.eq.s32.totalorder %s27, 1
    %p76 = por %p74, %p75
    %p78 = scmp.ne.s32.totalorder %s61, %s77
    %p79 = scmp.eq.s32.totalorder %s27, 0
    %p80 = por %p78, %p79
    %s81 = ssub.s32 %s21, %s28
    %p82 = scmp.eq.s32.totalorder %s81, 0
    %s84 = sadd.s32 %s83, 1
    %s85 = scalar_select %p82, %s83, %s84
    %p88 = pneg %p82
    %p89 = scmp.eq.s32.totalorder %s21, 1
    %p90 = por %p88, %p89
    %p91 = scmp.ne.s32.totalorder %s83, %s86
    %p92 = scmp.eq.s32.totalorder %s21, 0
    %p93 = por %p91, %p92
    %p94 = scmp.ne.s32.totalorder %s83, %s86
    %p95 = scmp.eq.s32.totalorder %s26, 1
    %p96 = por %p94, %p95
    %p97 = scmp.ne.s32.totalorder %s86, %s87
    %p98 = scmp.eq.s32.totalorder %s26, 0
    %p99 = por %p97, %p98
    %p100 = scmp.ne.s32.totalorder %s86, %s87
    %p101 = scmp.eq.s32.totalorder %s27, 1
    %p102 = por %p100, %p101
    %p104 = scmp.ne.s32.totalorder %s87, %s103
    %p105 = scmp.eq.s32.totalorder %s27, 0
    %p106 = por %p104, %p105
    %s108 = sadd.s32 %s107, 1
    %p111 = scmp.eq.s32.totalorder %s21, 1
    %p112 = scmp.ne.s32.totalorder %s107, %s109
    %p113 = scmp.eq.s32.totalorder %s21, 0
    %p114 = por %p112, %p113
    %p115 = scmp.ne.s32.totalorder %s107, %s109
    %p116 = scmp.eq.s32.totalorder %s26, 1
    %p117 = por %p115, %p116
    %p118 = scmp.ne.s32.totalorder %s109, %s110
    %p119 = scmp.eq.s32.totalorder %s26, 0
    %p120 = por %p118, %p119
    %p121 = scmp.ne.s32.totalorder %s109, %s110
    %p122 = scmp.eq.s32.totalorder %s27, 1
    %p123 = por %p121, %p122
    %p125 = scmp.ne.s32.totalorder %s110, %s124
    %p126 = scmp.eq.s32.totalorder %s27, 0
    %p127 = por %p125, %p126
    %s129 = sadd.s32 %s128, 1
    %p132 = scmp.eq.s32.totalorder %s21, 1
    %p133 = scmp.ne.s32.totalorder %s128, %s130
    %p134 = scmp.eq.s32.totalorder %s21, 0
    %p135 = por %p133, %p134
    %p136 = scmp.ne.s32.totalorder %s128, %s130
    %p137 = scmp.eq.s32.totalorder %s26, 1
    %p138 = por %p136, %p137
    %p139 = scmp.ne.s32.totalorder %s130, %s131
    %p140 = scmp.eq.s32.totalorder %s26, 0
    %p141 = por %p139, %p140
    %p142 = scmp.ne.s32.totalorder %s130, %s131
    %p143 = scmp.eq.s32.totalorder %s27, 1
    %p144 = por %p142, %p143
    %p146 = scmp.ne.s32.totalorder %s131, %s145
    %p147 = scmp.eq.s32.totalorder %s27, 0
    %p148 = por %p146, %p147
    %s150 = sadd.s32 %s149, 1
    %p153 = scmp.eq.s32.totalorder %s21, 1
    %p154 = scmp.ne.s32.totalorder %s149, %s151
    %p155 = scmp.eq.s32.totalorder %s21, 0
    %p156 = por %p154, %p155
    %p157 = scmp.ne.s32.totalorder %s149, %s151
    %p158 = scmp.eq.s32.totalorder %s26, 1
    %p159 = por %p157, %p158
    %p160 = scmp.ne.s32.totalorder %s151, %s152
    %p161 = scmp.eq.s32.totalorder %s26, 0
    %p162 = por %p160, %p161
    %p163 = scmp.ne.s32.totalorder %s151, %s152
    %p164 = scmp.eq.s32.totalorder %s27, 1
    %p165 = por %p163, %p164
    %p167 = scmp.ne.s32.totalorder %s152, %s166
    %p168 = scmp.eq.s32.totalorder %s27, 0
    %p169 = por %p167, %p168
    %s171 = sadd.s32 %s170, 1
    %p174 = scmp.eq.s32.totalorder %s21, 1
    %p175 = scmp.ne.s32.totalorder %s170, %s172
    %p176 = scmp.eq.s32.totalorder %s21, 0
    %p177 = por %p175, %p176
    %p178 = scmp.ne.s32.totalorder %s170, %s172
    %p179 = scmp.eq.s32.totalorder %s26, 1
    %p180 = por %p178, %p179
    %p181 = scmp.ne.s32.totalorder %s172, %s173
    %p182 = scmp.eq.s32.totalorder %s26, 0
    %p183 = por %p181, %p182
    %p184 = scmp.ne.s32.totalorder %s172, %s173
    %p185 = scmp.eq.s32.totalorder %s27, 1
    %p186 = por %p184, %p185
    %p188 = scmp.ne.s32.totalorder %s173, %s187
    %p189 = scmp.eq.s32.totalorder %s27, 0
    %p190 = por %p188, %p189
    %s192 = sadd.s32 %s191, 1
    %p195 = scmp.eq.s32.totalorder %s21, 1
    %p196 = scmp.ne.s32.totalorder %s191, %s193
    %p197 = scmp.eq.s32.totalorder %s21, 0
    %p198 = por %p196, %p197
    %p199 = scmp.ne.s32.totalorder %s191, %s193
    %p200 = scmp.eq.s32.totalorder %s26, 1
    %p201 = por %p199, %p200
    %p202 = scmp.ne.s32.totalorder %s193, %s194
    %p203 = scmp.eq.s32.totalorder %s26, 0
    %p204 = por %p202, %p203
    %p205 = scmp.ne.s32.totalorder %s193, %s194
    %p206 = scmp.eq.s32.totalorder %s27, 1
    %p207 = por %p205, %p206
    %p209 = scmp.ne.s32.totalorder %s194, %s208
    %p210 = scmp.eq.s32.totalorder %s27, 0
    %p211 = por %p209, %p210
    %s213 = sadd.s32 %s212, 1
    %p216 = scmp.eq.s32.totalorder %s21, 1
    %p217 = scmp.ne.s32.totalorder %s212, %s214
    %p218 = scmp.eq.s32.totalorder %s21, 0
    %p219 = por %p217, %p218
    %p220 = scmp.ne.s32.totalorder %s212, %s214
    %p221 = scmp.eq.s32.totalorder %s26, 1
    %p222 = por %p220, %p221
    %p223 = scmp.ne.s32.totalorder %s214, %s215
    %p224 = scmp.eq.s32.totalorder %s26, 0
    %p225 = por %p223, %p224
    %p226 = scmp.ne.s32.totalorder %s214, %s215
    %p227 = scmp.eq.s32.totalorder %s27, 1
    %p228 = por %p226, %p227
    %p230 = scmp.ne.s32.totalorder %s215, %s229
    %p231 = scmp.eq.s32.totalorder %s27, 0
    %p232 = por %p230, %p231
    %s234 = sadd.s32 %s233, 1
    %p237 = scmp.eq.s32.totalorder %s21, 1
    %p238 = scmp.ne.s32.totalorder %s233, %s235
    %p239 = scmp.eq.s32.totalorder %s21, 0
    %p240 = por %p238, %p239
    %p241 = scmp.ne.s32.totalorder %s233, %s235
    %p242 = scmp.eq.s32.totalorder %s26, 1
    %p243 = por %p241, %p242
    %p244 = scmp.ne.s32.totalorder %s235, %s236
    %p245 = scmp.eq.s32.totalorder %s26, 0
    %p246 = por %p244, %p245
    %p247 = scmp.ne.s32.totalorder %s235, %s236
    %p248 = scmp.eq.s32.totalorder %s27, 1
    %p249 = por %p247, %p248
    %p251 = scmp.ne.s32.totalorder %s236, %s250
    %p252 = scmp.eq.s32.totalorder %s27, 0
    %p253 = por %p251, %p252
    %s255 = sadd.s32 %s254, 1
    %p258 = scmp.eq.s32.totalorder %s21, 1
    %p259 = scmp.ne.s32.totalorder %s254, %s256
    %p260 = scmp.eq.s32.totalorder %s21, 0
    %p261 = por %p259, %p260
    %p262 = scmp.ne.s32.totalorder %s254, %s256
    %p263 = scmp.eq.s32.totalorder %s26, 1
    %p264 = por %p262, %p263
    %p265 = scmp.ne.s32.totalorder %s256, %s257
    %p266 = scmp.eq.s32.totalorder %s26, 0
    %p267 = por %p265, %p266
    %p268 = scmp.ne.s32.totalorder %s256, %s257
    %p269 = scmp.eq.s32.totalorder %s27, 1
    %p270 = por %p268, %p269
    %p272 = scmp.ne.s32.totalorder %s257, %s271
    %p273 = scmp.eq.s32.totalorder %s27, 0
    %p274 = por %p272, %p273
    %s276 = sadd.s32 %s275, 1
    %p279 = scmp.eq.s32.totalorder %s21, 1
    %p280 = scmp.ne.s32.totalorder %s275, %s277
    %p281 = scmp.eq.s32.totalorder %s21, 0
    %p282 = por %p280, %p281
    %p283 = scmp.ne.s32.totalorder %s275, %s277
    %p284 = scmp.eq.s32.totalorder %s26, 1
    %p285 = por %p283, %p284
    %p286 = scmp.ne.s32.totalorder %s277, %s278
    %p287 = scmp.eq.s32.totalorder %s26, 0
    %p288 = por %p286, %p287
    %p289 = scmp.ne.s32.totalorder %s277, %s278
    %p290 = scmp.eq.s32.totalorder %s27, 1
    %p291 = por %p289, %p290
    %p293 = scmp.ne.s32.totalorder %s278, %s292
    %p294 = scmp.eq.s32.totalorder %s27, 0
    %p295 = por %p293, %p294
    %s297 = sadd.s32 %s296, 1
    %p300 = scmp.eq.s32.totalorder %s21, 1
    %p301 = scmp.ne.s32.totalorder %s296, %s298
    %p302 = scmp.eq.s32.totalorder %s21, 0
    %p303 = por %p301, %p302
    %p304 = scmp.ne.s32.totalorder %s296, %s298
    %p305 = scmp.eq.s32.totalorder %s26, 1
    %p306 = por %p304, %p305
    %p307 = scmp.ne.s32.totalorder %s298, %s299
    %p308 = scmp.eq.s32.totalorder %s26, 0
    %p309 = por %p307, %p308
    %p310 = scmp.ne.s32.totalorder %s298, %s299
    %p311 = scmp.eq.s32.totalorder %s27, 1
    %p312 = por %p310, %p311
    %p314 = scmp.ne.s32.totalorder %s299, %s313
    %p315 = scmp.eq.s32.totalorder %s27, 0
    %p316 = por %p314, %p315
    %s318 = sadd.s32 %s317, 1
    %p321 = scmp.eq.s32.totalorder %s21, 1
    %p322 = scmp.ne.s32.totalorder %s317, %s319
    %p323 = scmp.eq.s32.totalorder %s21, 0
    %p324 = por %p322, %p323
    %p325 = scmp.ne.s32.totalorder %s317, %s319
    %p326 = scmp.eq.s32.totalorder %s26, 1
    %p327 = por %p325, %p326
    %p328 = scmp.ne.s32.totalorder %s319, %s320
    %p329 = scmp.eq.s32.totalorder %s26, 0
    %p330 = por %p328, %p329
    %p331 = scmp.ne.s32.totalorder %s319, %s320
    %p332 = scmp.eq.s32.totalorder %s27, 1
    %p333 = por %p331, %p332
    %p335 = scmp.ne.s32.totalorder %s320, %s334
    %p336 = scmp.eq.s32.totalorder %s27, 0
    %p337 = por %p335, %p336
    %s339 = sadd.s32 %s338, 1
    %p342 = scmp.eq.s32.totalorder %s21, 1
    %p343 = scmp.ne.s32.totalorder %s338, %s340
    %p344 = scmp.eq.s32.totalorder %s21, 0
    %p345 = por %p343, %p344
    %p346 = scmp.ne.s32.totalorder %s338, %s340
    %p347 = scmp.eq.s32.totalorder %s26, 1
    %p348 = por %p346, %p347
    %p349 = scmp.ne.s32.totalorder %s340, %s341
    %p350 = scmp.eq.s32.totalorder %s26, 0
    %p351 = por %p349, %p350
    %p352 = scmp.ne.s32.totalorder %s340, %s341
    %p353 = scmp.eq.s32.totalorder %s27, 1
    %p354 = por %p352, %p353
    %p356 = scmp.ne.s32.totalorder %s341, %s355
    %p357 = scmp.eq.s32.totalorder %s27, 0
    %p358 = por %p356, %p357
    %s359 = ssub.s32 %s21, %s28
    %p360 = scmp.eq.s32.totalorder %s359, 0
    %s362 = sadd.s32 %s361, 1
    %s363 = scalar_select %p360, %s361, %s362
    %p366 = pneg %p360
    %p367 = scmp.eq.s32.totalorder %s21, 1
    %p368 = por %p366, %p367
    %p369 = scmp.ne.s32.totalorder %s361, %s364
    %p370 = scmp.eq.s32.totalorder %s21, 0
    %p371 = por %p369, %p370
    %p372 = scmp.ne.s32.totalorder %s361, %s364
    %p373 = scmp.eq.s32.totalorder %s26, 1
    %p374 = por %p372, %p373
    %p375 = scmp.ne.s32.totalorder %s364, %s365
    %p376 = scmp.eq.s32.totalorder %s26, 0
    %p377 = por %p375, %p376
    %p378 = scmp.ne.s32.totalorder %s364, %s365
    %p379 = scmp.eq.s32.totalorder %s27, 1
    %p380 = por %p378, %p379
    %p382 = scmp.ne.s32.totalorder %s365, %s381
    %p383 = scmp.eq.s32.totalorder %s27, 0
    %p384 = por %p382, %p383
    %p385 = scmp.le.s32.totalorder 1, %s21
    %p386 = scmp.lt.s32.totalorder %s21, 3
    %p387 = pnand %p385, %p386
    %p388 = pneg %p387
    // Predicated region
    $region9: #{tpu_custom_call.1} parent=5 // pred_check
      _
    $region10: #{tpu_custom_call.1} parent=5 // pred_check_branch
      %390 = sbr.rel (%p387) target = $region12
    $region11: #{tpu_custom_call.1} parent=5 // pred_region
      %s391 = ssub.s32 %s21, 1
      // Predicated region
      $region13: #{tpu_custom_call.1} parent=11 // pred_check
        %p392 = pneg %p120
      $region14: #{tpu_custom_call.1} parent=11 // pred_check_branch
        %394 = sbr.rel (%p392) target = $region16
      $region15: #{tpu_custom_call.1} parent=11 // pred_region
        _
      $region16: #{tpu_custom_call.1} parent=11 // pred_fallthru
        _
      // Predicated region
      $region17: #{tpu_custom_call.1} parent=11 // pred_check
        %p395 = pneg %p141
      $region18: #{tpu_custom_call.1} parent=11 // pred_check_branch
        %397 = sbr.rel (%p395) target = $region20
      $region19: #{tpu_custom_call.1} parent=11 // pred_region
        _
      $region20: #{tpu_custom_call.1} parent=11 // pred_fallthru
        _
      // Predicated region
      $region21: #{tpu_custom_call.1} parent=11 // pred_check
        %p398 = pneg %p162
      $region22: #{tpu_custom_call.1} parent=11 // pred_check_branch
        %400 = sbr.rel (%p398) target = $region24
      $region23: #{tpu_custom_call.1} parent=11 // pred_region
        _
      $region24: #{tpu_custom_call.1} parent=11 // pred_fallthru
        _
      // Predicated region
      $region25: #{tpu_custom_call.1} parent=11 // pred_check
        %p401 = pneg %p183
      $region26: #{tpu_custom_call.1} parent=11 // pred_check_branch
        %403 = sbr.rel (%p401) target = $region28
      $region27: #{tpu_custom_call.1} parent=11 // pred_region
        _
      $region28: #{tpu_custom_call.1} parent=11 // pred_fallthru
        _
      // Predicated region
      $region29: #{tpu_custom_call.1} parent=11 // pred_check
        %p404 = pneg %p204
      $region30: #{tpu_custom_call.1} parent=11 // pred_check_branch
        %406 = sbr.rel (%p404) target = $region32
      $region31: #{tpu_custom_call.1} parent=11 // pred_region
        _
      $region32: #{tpu_custom_call.1} parent=11 // pred_fallthru
        _
      // Predicated region
      $region33: #{tpu_custom_call.1} parent=11 // pred_check
        %p407 = pneg %p225
      $region34: #{tpu_custom_call.1} parent=11 // pred_check_branch
        %409 = sbr.rel (%p407) target = $region36
      $region35: #{tpu_custom_call.1} parent=11 // pred_region
        _
      $region36: #{tpu_custom_call.1} parent=11 // pred_fallthru
        _
      // Predicated region
      $region37: #{tpu_custom_call.1} parent=11 // pred_check
        %p410 = pneg %p246
      $region38: #{tpu_custom_call.1} parent=11 // pred_check_branch
        %412 = sbr.rel (%p410) target = $region40
      $region39: #{tpu_custom_call.1} parent=11 // pred_region
        _
      $region40: #{tpu_custom_call.1} parent=11 // pred_fallthru
        _
      // Predicated region
      $region41: #{tpu_custom_call.1} parent=11 // pred_check
        %p413 = pneg %p267
      $region42: #{tpu_custom_call.1} parent=11 // pred_check_branch
        %415 = sbr.rel (%p413) target = $region44
      $region43: #{tpu_custom_call.1} parent=11 // pred_region
        _
      $region44: #{tpu_custom_call.1} parent=11 // pred_fallthru
        _
      // Predicated region
      $region45: #{tpu_custom_call.1} parent=11 // pred_check
        %p416 = pneg %p288
      $region46: #{tpu_custom_call.1} parent=11 // pred_check_branch
        %418 = sbr.rel (%p416) target = $region48
      $region47: #{tpu_custom_call.1} parent=11 // pred_region
        _
      $region48: #{tpu_custom_call.1} parent=11 // pred_fallthru
        _
      // Predicated region
      $region49: #{tpu_custom_call.1} parent=11 // pred_check
        %p419 = pneg %p309
      $region50: #{tpu_custom_call.1} parent=11 // pred_check_branch
        %421 = sbr.rel (%p419) target = $region52
      $region51: #{tpu_custom_call.1} parent=11 // pred_region
        _
      $region52: #{tpu_custom_call.1} parent=11 // pred_fallthru
        _
      // Predicated region
      $region53: #{tpu_custom_call.1} parent=11 // pred_check
        %p422 = pneg %p330
      $region54: #{tpu_custom_call.1} parent=11 // pred_check_branch
        %424 = sbr.rel (%p422) target = $region56
      $region55: #{tpu_custom_call.1} parent=11 // pred_region
        _
      $region56: #{tpu_custom_call.1} parent=11 // pred_fallthru
        _
      // Predicated region
      $region57: #{tpu_custom_call.1} parent=11 // pred_check
        %p425 = pneg %p351
      $region58: #{tpu_custom_call.1} parent=11 // pred_check_branch
        %427 = sbr.rel (%p425) target = $region60
      $region59: #{tpu_custom_call.1} parent=11 // pred_region
        _
      $region60: #{tpu_custom_call.1} parent=11 // pred_fallthru
        _
    $region12: #{tpu_custom_call.1} parent=5 // pred_fallthru
      _
    %p428 = scmp.lt.s32.totalorder %s21, 2
    // Predicated region
    $region61: #{tpu_custom_call.1} parent=5 // pred_check
      %p429 = pneg %p428
    $region62: #{tpu_custom_call.1} parent=5 // pred_check_branch
      %431 = sbr.rel (%p429) target = $region64
    $region63: #{tpu_custom_call.1} parent=5 // pred_region
      // Predicated region
      $region65: #{tpu_custom_call.1} parent=63 // pred_check
        %p432 = pneg %p41
      $region66: #{tpu_custom_call.1} parent=63 // pred_check_branch
        %434 = sbr.rel (%p432) target = $region68
      $region67: #{tpu_custom_call.1} parent=63 // pred_region
        %p435 = scmp.lt.s32.totalorder %s21, 1
        %s436 = scalar_select %p435, %s21, 1
        %s437 = smul.addr %s436, 8
        %s438 = smul.addr %s437, 8
        %s439 = scalar_lea.vmem %s0, %s438
      $region68: #{tpu_custom_call.1} parent=63 // pred_fallthru
        _
      // Predicated region
      $region69: #{tpu_custom_call.1} parent=63 // pred_check
        %p440 = pneg %p67
      $region70: #{tpu_custom_call.1} parent=63 // pred_check_branch
        %442 = sbr.rel (%p440) target = $region72
      $region71: #{tpu_custom_call.1} parent=63 // pred_region
        %p443 = scmp.lt.s32.totalorder %s21, 1
        %s444 = scalar_select %p443, %s21, 1
        %s445 = smul.addr %s444, 8
        %s446 = smul.addr %s445, 8
        %s447 = scalar_lea.vmem %s1, %s446
      $region72: #{tpu_custom_call.1} parent=63 // pred_fallthru
        _
      // Predicated region
      $region73: #{tpu_custom_call.1} parent=63 // pred_check
        %p448 = pneg %p93
      $region74: #{tpu_custom_call.1} parent=63 // pred_check_branch
        %450 = sbr.rel (%p448) target = $region76
      $region75: #{tpu_custom_call.1} parent=63 // pred_region
        %p451 = scmp.lt.s32.totalorder %s21, 1
        %s452 = scalar_select %p451, %s21, 1
        %s453 = smul.addr %s452, 8
        %s454 = smul.addr %s453, 8
        %s455 = scalar_lea.vmem %s2, %s454
      $region76: #{tpu_custom_call.1} parent=63 // pred_fallthru
        _
    $region64: #{tpu_custom_call.1} parent=5 // pred_fallthru
      _
    %p456 = scmp.le.s32.totalorder 1, %s21
    %p457 = scmp.lt.s32.totalorder %s21, 3
    %p458 = pnand %p456, %p457
    %p459 = pneg %p458
    // Predicated region
    $region77: #{tpu_custom_call.1} parent=5 // pred_check
      _
    $region78: #{tpu_custom_call.1} parent=5 // pred_check_branch
      %461 = sbr.rel (%p458) target = $region80
    $region79: #{tpu_custom_call.1} parent=5 // pred_region
      %s462 = ssub.s32 %s21, 1
      %p463 = scmp.lt.s32.totalorder %s26, 1
      %s464 = scalar_select %p463, %s26, 1
      %s465 = smul.addr %s464, 8
      %s466 = smul.addr %s465, 8
      %s467 = scalar_lea.vmem %s0, %s466
      %p468 = pneg %p47
      %p469 = pneg %p44
      %p470 = scmp.lt.s32.totalorder %s26, 1
      %s471 = scalar_select %p470, %s26, 1
      %s472 = smul.addr %s471, 8
      %s473 = smul.addr %s472, 8
      %s474 = scalar_lea.vmem %s1, %s473
      %p475 = pneg %p73
      %p476 = pneg %p70
      %p477 = scmp.lt.s32.totalorder %s26, 1
      %s478 = scalar_select %p477, %s26, 1
      %s479 = smul.addr %s478, 8
      %s480 = smul.addr %s479, 8
      %s481 = scalar_lea.vmem %s2, %s480
      %p482 = pneg %p99
      %p483 = pneg %p96
      %p484 = pneg %p120
      %p485 = pneg %p117
      %p486 = pneg %p141
      %p487 = pneg %p138
      %p488 = pneg %p162
      %p489 = pneg %p159
      %p490 = pneg %p183
      %p491 = pneg %p180
      %p492 = pneg %p204
      %p493 = pneg %p201
      %p494 = pneg %p225
      %p495 = pneg %p222
      %p496 = pneg %p246
      %p497 = pneg %p243
      %p498 = pneg %p267
      %p499 = pneg %p264
      %p500 = pneg %p288
      %p501 = pneg %p285
      %p502 = pneg %p309
      %p503 = pneg %p306
      %p504 = pneg %p330
      %p505 = pneg %p327
      %p506 = pneg %p351
      %p507 = pneg %p348
      %p508 = pneg %p377
      %p509 = pneg %p374
      %p510 = scmp.lt.s32.totalorder %s26, 1
      %s511 = scalar_select %p510, %s26, 1
      %s512 = smul.addr %s511, 8
      %s513 = smul.addr %s512, 8
      %s514 = scalar_lea.vmem %s15, %s513
      %p515 = scmp.lt.s32.totalorder %s26, 1
      %s516 = scalar_select %p515, %s26, 1
      %s517 = smul.addr %s516, 8
      %s518 = smul.addr %s517, 8
      %s519 = scalar_lea.vmem %s0, %s518
      %p520 = scmp.lt.s32.totalorder %s26, 1
      %s521 = scalar_select %p520, %s26, 1
      %s522 = smul.addr %s521, 8
      %s523 = smul.addr %s522, 8
      %s524 = scalar_lea.vmem %s1, %s523
      %p525 = scmp.lt.s32.totalorder %s26, 1
      %s526 = scalar_select %p525, %s26, 1
      %s527 = smul.addr %s526, 8
      %s528 = smul.addr %s527, 8
      %s529 = scalar_lea.vmem %s2, %s528
      %p530 = scmp.lt.s32.totalorder %s26, 1
      %s531 = scalar_select %p530, %s26, 1
      %s532 = smul.addr %s531, 8
      %s533 = smul.addr %s532, 8
      %s534 = scalar_lea.vmem %s15, %s533
      %v535 = vld [vmem:[%s524] sm:$0xff]
      %v536 = vld [vmem:[%s524 + $0x8] sm:$0xff]
      %v537 = vld [vmem:[%s524 + $0x10] sm:$0xff]
      %v538 = vld [vmem:[%s524 + $0x18] sm:$0xff]
      %v539 = vld [vmem:[%s524 + $0x20] sm:$0xff]
      %v540 = vld [vmem:[%s524 + $0x28] sm:$0xff]
      %v541 = vld [vmem:[%s524 + $0x30] sm:$0xff]
      %v542 = vld [vmem:[%s524 + $0x38] sm:$0xff]
      %v543 = vld [vmem:[%s3] sm:$0xff]
      %v544 = vld [vmem:[%s3 + $0x8] sm:$0xff]
      %v545 = vld [vmem:[%s4] sm:$0x1]
      %v547 = vlaneseq
      %v548 = vshrl.u32 %v547, 7
      %v549 = vsub.s32 0, %v548
      %v550 = vrot.slane %v545, %v549
      %vm552 = vcmask 130048
      %v554 = vsel %vm552, %v535, 0
      %v557 = vsel %vm552, %v536, 0
      %v560 = vsel %vm552, %v537, 0
      %v563 = vsel %vm552, %v538, 0
      %v566 = vsel %vm552, %v539, 0
      %v569 = vsel %vm552, %v540, 0
      %v572 = vsel %vm552, %v541, 0
      %v575 = vsel %vm552, %v542, 0
      %577 = vmatprep.subr.mxu0 0.0
      %578 = vmatpush1.msra.mxu0 0.0
      %579 = vmatprep.subr.mxu0 0.0
      %580 = vmatpush1.msra.mxu0 0.0
      %581 = vmatprep.subr.mxu0 0.0
      %582 = vmatpush1.msra.mxu0 0.0
      %583 = vmatprep.subr.mxu0 0.0
      %584 = vmatpush1.msra.mxu0 0.0
      %585 = vmatprep.subr.mxu0 0.0
      %586 = vmatpush1.msra.mxu0 0.0
      %587 = vmatprep.subr.mxu0 0.0
      %588 = vmatpush1.msra.mxu0 0.0
      %589 = vmatprep.subr.mxu0 0.0
      %590 = vmatpush1.msra.mxu0 0.0
      %591 = vmatprep.subr.mxu0 0.0
      %592 = vmatpush1.msra.mxu0 0.0
      %593 = vmatprep.subr.mxu0 0.0
      %594 = vmatpush1.msra.mxu0 0.0
      %595 = vmatprep.subr.mxu0 0.0
      %596 = vmatpush1.msra.mxu0 0.0
      %597 = vmatprep.subr.mxu0 0.0
      %598 = vmatpush1.msra.mxu0 0.0
      %599 = vmatprep.subr.mxu0 0.0
      %600 = vmatpush1.msra.mxu0 0.0
      %601 = vmatprep.subr.mxu0 0.0
      %602 = vmatpush1.msra.mxu0 0.0
      %603 = vmatprep.subr.mxu0 0.0
      %604 = vmatpush1.msra.mxu0 0.0
      %605 = vmatprep.subr.mxu0 0.0
      %606 = vmatpush1.msra.mxu0 %v544
      %607 = vmatprep.subr.mxu0 0.0
      %608 = vmatpush1.msra.mxu0 %v543
      %609 = vmatprep.subr.mxu0 0.0
      %610 = vmatpush2.msra.mxu0 0.0
      %611 = vmatprep.subr.mxu0 0.0
      %612 = vmatpush2.msra.mxu0 0.0
      %613 = vmatprep.subr.mxu0 0.0
      %614 = vmatpush2.msra.mxu0 0.0
      %615 = vmatprep.subr.mxu0 0.0
      %616 = vmatpush2.msra.mxu0 0.0
      %617 = vmatprep.subr.mxu0 0.0
      %618 = vmatpush2.msra.mxu0 0.0
      %619 = vmatprep.subr.mxu0 0.0
      %620 = vmatpush2.msra.mxu0 0.0
      %621 = vmatprep.subr.mxu0 0.0
      %622 = vmatpush2.msra.mxu0 0.0
      %623 = vmatprep.subr.mxu0 0.0
      %624 = vmatpush2.msra.mxu0 0.0
      %625 = vmatprep.subr.mxu0 0.0
      %626 = vmatpush2.msra.mxu0 0.0
      %627 = vmatprep.subr.mxu0 0.0
      %628 = vmatpush2.msra.mxu0 0.0
      %629 = vmatprep.subr.mxu0 0.0
      %630 = vmatpush2.msra.mxu0 0.0
      %631 = vmatprep.subr.mxu0 0.0
      %632 = vmatpush2.msra.mxu0 0.0
      %633 = vmatprep.subr.mxu0 0.0
      %634 = vmatpush2.msra.mxu0 0.0
      %635 = vmatprep.subr.mxu0 0.0
      %636 = vmatpush2.msra.mxu0 0.0
      %637 = vmatprep.subr.mxu0 0.0
      %638 = vmatpush2.msra.mxu0 0.0
      %639 = vmatprep.subr.mxu0 0.0
      %640 = vmatpush2.msra.mxu0 0.0
      %641 = vmatprep.mubr.f32.mxu0 0.0
      %642 = vmatmul.mubr.f32.gmra.mxu0 %v554
      %v643 = vpop.f32.mrf.mxu0
      %v644 = vadd.f32 %v550, %v643
      %v645 = vpop.f32.mrf.mxu0
      %646 = vmatprep.mubr.f32.mxu0 0.0
      %647 = vmatmul.mubr.f32.gmra.mxu0 %v557
      %v648 = vpop.f32.mrf.mxu0
      %v649 = vadd.f32 %v550, %v648
      %v650 = vpop.f32.mrf.mxu0
      %651 = vmatprep.mubr.f32.mxu0 0.0
      %652 = vmatmul.mubr.f32.gmra.mxu0 %v560
      %v653 = vpop.f32.mrf.mxu0
      %v654 = vadd.f32 %v550, %v653
      %v655 = vpop.f32.mrf.mxu0
      %656 = vmatprep.mubr.f32.mxu0 0.0
      %657 = vmatmul.mubr.f32.gmra.mxu0 %v563
      %v658 = vpop.f32.mrf.mxu0
      %v659 = vadd.f32 %v550, %v658
      %v660 = vpop.f32.mrf.mxu0
      %661 = vmatprep.mubr.f32.mxu0 0.0
      %662 = vmatmul.mubr.f32.gmra.mxu0 %v566
      %v663 = vpop.f32.mrf.mxu0
      %v664 = vadd.f32 %v550, %v663
      %v665 = vpop.f32.mrf.mxu0
      %666 = vmatprep.mubr.f32.mxu0 0.0
      %667 = vmatmul.mubr.f32.gmra.mxu0 %v569
      %v668 = vpop.f32.mrf.mxu0
      %v669 = vadd.f32 %v550, %v668
      %v670 = vpop.f32.mrf.mxu0
      %671 = vmatprep.mubr.f32.mxu0 0.0
      %672 = vmatmul.mubr.f32.gmra.mxu0 %v572
      %v673 = vpop.f32.mrf.mxu0
      %v674 = vadd.f32 %v550, %v673
      %v675 = vpop.f32.mrf.mxu0
      %676 = vmatprep.mubr.f32.mxu0 0.0
      %677 = vmatmul.mubr.f32.gmra.mxu0 %v575
      %v678 = vpop.f32.mrf.mxu0
      %v679 = vadd.f32 %v550, %v678
      %v680 = vpop.f32.mrf.mxu0
      %681 = vdwg.mxu0
      %v682 = vld [vmem:[%s5] sm:$0xff]
      %v683 = vld [vmem:[%s5 + $0x8] sm:$0xff]
      %v684 = vld [vmem:[%s6] sm:$0x1]
      %v686 = vlaneseq
      %v687 = vshrl.u32 %v686, 7
      %v688 = vsub.s32 0, %v687
      %v689 = vrot.slane %v684, %v688
      %691 = vmatprep.subr.mxu0 0.0
      %692 = vmatpush1.msra.mxu0 0.0
      %693 = vmatprep.subr.mxu0 0.0
      %694 = vmatpush1.msra.mxu0 0.0
      %695 = vmatprep.subr.mxu0 0.0
      %696 = vmatpush1.msra.mxu0 0.0
      %697 = vmatprep.subr.mxu0 0.0
      %698 = vmatpush1.msra.mxu0 0.0
      %699 = vmatprep.subr.mxu0 0.0
      %700 = vmatpush1.msra.mxu0 0.0
      %701 = vmatprep.subr.mxu0 0.0
      %702 = vmatpush1.msra.mxu0 0.0
      %703 = vmatprep.subr.mxu0 0.0
      %704 = vmatpush1.msra.mxu0 0.0
      %705 = vmatprep.subr.mxu0 0.0
      %706 = vmatpush1.msra.mxu0 0.0
      %707 = vmatprep.subr.mxu0 0.0
      %708 = vmatpush1.msra.mxu0 0.0
      %709 = vmatprep.subr.mxu0 0.0
      %710 = vmatpush1.msra.mxu0 0.0
      %711 = vmatprep.subr.mxu0 0.0
      %712 = vmatpush1.msra.mxu0 0.0
      %713 = vmatprep.subr.mxu0 0.0
      %714 = vmatpush1.msra.mxu0 0.0
      %715 = vmatprep.subr.mxu0 0.0
      %716 = vmatpush1.msra.mxu0 0.0
      %717 = vmatprep.subr.mxu0 0.0
      %718 = vmatpush1.msra.mxu0 0.0
      %719 = vmatprep.subr.mxu0 0.0
      %720 = vmatpush1.msra.mxu0 %v683
      %721 = vmatprep.subr.mxu0 0.0
      %722 = vmatpush1.msra.mxu0 %v682
      %723 = vmatprep.subr.mxu0 0.0
      %724 = vmatpush2.msra.mxu0 0.0
      %725 = vmatprep.subr.mxu0 0.0
      %726 = vmatpush2.msra.mxu0 0.0
      %727 = vmatprep.subr.mxu0 0.0
      %728 = vmatpush2.msra.mxu0 0.0
      %729 = vmatprep.subr.mxu0 0.0
      %730 = vmatpush2.msra.mxu0 0.0
      %731 = vmatprep.subr.mxu0 0.0
      %732 = vmatpush2.msra.mxu0 0.0
      %733 = vmatprep.subr.mxu0 0.0
      %734 = vmatpush2.msra.mxu0 0.0
      %735 = vmatprep.subr.mxu0 0.0
      %736 = vmatpush2.msra.mxu0 0.0
      %737 = vmatprep.subr.mxu0 0.0
      %738 = vmatpush2.msra.mxu0 0.0
      %739 = vmatprep.subr.mxu0 0.0
      %740 = vmatpush2.msra.mxu0 0.0
      %741 = vmatprep.subr.mxu0 0.0
      %742 = vmatpush2.msra.mxu0 0.0
      %743 = vmatprep.subr.mxu0 0.0
      %744 = vmatpush2.msra.mxu0 0.0
      %745 = vmatprep.subr.mxu0 0.0
      %746 = vmatpush2.msra.mxu0 0.0
      %747 = vmatprep.subr.mxu0 0.0
      %748 = vmatpush2.msra.mxu0 0.0
      %749 = vmatprep.subr.mxu0 0.0
      %750 = vmatpush2.msra.mxu0 0.0
      %751 = vmatprep.subr.mxu0 0.0
      %752 = vmatpush2.msra.mxu0 0.0
      %753 = vmatprep.subr.mxu0 0.0
      %754 = vmatpush2.msra.mxu0 0.0
      %755 = vmatprep.mubr.f32.mxu0 0.0
      %756 = vmatmul.mubr.f32.gmra.mxu0 %v554
      %v757 = vpop.f32.mrf.mxu0
      %v758 = vadd.f32 %v689, %v757
      %v759 = vpop.f32.mrf.mxu0
      %760 = vmatprep.mubr.f32.mxu0 0.0
      %761 = vmatmul.mubr.f32.gmra.mxu0 %v557
      %v762 = vpop.f32.mrf.mxu0
      %v763 = vadd.f32 %v689, %v762
      %v764 = vpop.f32.mrf.mxu0
      %765 = vmatprep.mubr.f32.mxu0 0.0
      %766 = vmatmul.mubr.f32.gmra.mxu0 %v560
      %v767 = vpop.f32.mrf.mxu0
      %v768 = vadd.f32 %v689, %v767
      %v769 = vpop.f32.mrf.mxu0
      %770 = vmatprep.mubr.f32.mxu0 0.0
      %771 = vmatmul.mubr.f32.gmra.mxu0 %v563
      %v772 = vpop.f32.mrf.mxu0
      %v773 = vadd.f32 %v689, %v772
      %v774 = vpop.f32.mrf.mxu0
      %775 = vmatprep.mubr.f32.mxu0 0.0
      %776 = vmatmul.mubr.f32.gmra.mxu0 %v566
      %v777 = vpop.f32.mrf.mxu0
      %v778 = vadd.f32 %v689, %v777
      %v779 = vpop.f32.mrf.mxu0
      %780 = vmatprep.mubr.f32.mxu0 0.0
      %781 = vmatmul.mubr.f32.gmra.mxu0 %v569
      %v782 = vpop.f32.mrf.mxu0
      %v783 = vadd.f32 %v689, %v782
      %v784 = vpop.f32.mrf.mxu0
      %785 = vmatprep.mubr.f32.mxu0 0.0
      %786 = vmatmul.mubr.f32.gmra.mxu0 %v572
      %v787 = vpop.f32.mrf.mxu0
      %v788 = vadd.f32 %v689, %v787
      %v789 = vpop.f32.mrf.mxu0
      %790 = vmatprep.mubr.f32.mxu0 0.0
      %791 = vmatmul.mubr.f32.gmra.mxu0 %v575
      %v792 = vpop.f32.mrf.mxu0
      %v793 = vadd.f32 %v689, %v792
      %v794 = vpop.f32.mrf.mxu0
      %795 = vdwg.mxu0
      %v796 = vld [vmem:[%s7] sm:$0xff]
      %v797 = vld [vmem:[%s7 + $0x8] sm:$0xff]
      %v798 = vld [vmem:[%s8] sm:$0x1]
      %v800 = vlaneseq
      %v801 = vshrl.u32 %v800, 7
      %v802 = vsub.s32 0, %v801
      %v803 = vrot.slane %v798, %v802
      %805 = vmatprep.subr.mxu0 0.0
      %806 = vmatpush1.msra.mxu0 0.0
      %807 = vmatprep.subr.mxu0 0.0
      %808 = vmatpush1.msra.mxu0 0.0
      %809 = vmatprep.subr.mxu0 0.0
      %810 = vmatpush1.msra.mxu0 0.0
      %811 = vmatprep.subr.mxu0 0.0
      %812 = vmatpush1.msra.mxu0 0.0
      %813 = vmatprep.subr.mxu0 0.0
      %814 = vmatpush1.msra.mxu0 0.0
      %815 = vmatprep.subr.mxu0 0.0
      %816 = vmatpush1.msra.mxu0 0.0
      %817 = vmatprep.subr.mxu0 0.0
      %818 = vmatpush1.msra.mxu0 0.0
      %819 = vmatprep.subr.mxu0 0.0
      %820 = vmatpush1.msra.mxu0 0.0
      %821 = vmatprep.subr.mxu0 0.0
      %822 = vmatpush1.msra.mxu0 0.0
      %823 = vmatprep.subr.mxu0 0.0
      %824 = vmatpush1.msra.mxu0 0.0
      %825 = vmatprep.subr.mxu0 0.0
      %826 = vmatpush1.msra.mxu0 0.0
      %827 = vmatprep.subr.mxu0 0.0
      %828 = vmatpush1.msra.mxu0 0.0
      %829 = vmatprep.subr.mxu0 0.0
      %830 = vmatpush1.msra.mxu0 0.0
      %831 = vmatprep.subr.mxu0 0.0
      %832 = vmatpush1.msra.mxu0 0.0
      %833 = vmatprep.subr.mxu0 0.0
      %834 = vmatpush1.msra.mxu0 %v797
      %835 = vmatprep.subr.mxu0 0.0
      %836 = vmatpush1.msra.mxu0 %v796
      %837 = vmatprep.subr.mxu0 0.0
      %838 = vmatpush2.msra.mxu0 0.0
      %839 = vmatprep.subr.mxu0 0.0
      %840 = vmatpush2.msra.mxu0 0.0
      %841 = vmatprep.subr.mxu0 0.0
      %842 = vmatpush2.msra.mxu0 0.0
      %843 = vmatprep.subr.mxu0 0.0
      %844 = vmatpush2.msra.mxu0 0.0
      %845 = vmatprep.subr.mxu0 0.0
      %846 = vmatpush2.msra.mxu0 0.0
      %847 = vmatprep.subr.mxu0 0.0
      %848 = vmatpush2.msra.mxu0 0.0
      %849 = vmatprep.subr.mxu0 0.0
      %850 = vmatpush2.msra.mxu0 0.0
      %851 = vmatprep.subr.mxu0 0.0
      %852 = vmatpush2.msra.mxu0 0.0
      %853 = vmatprep.subr.mxu0 0.0
      %854 = vmatpush2.msra.mxu0 0.0
      %855 = vmatprep.subr.mxu0 0.0
      %856 = vmatpush2.msra.mxu0 0.0
      %857 = vmatprep.subr.mxu0 0.0
      %858 = vmatpush2.msra.mxu0 0.0
      %859 = vmatprep.subr.mxu0 0.0
      %860 = vmatpush2.msra.mxu0 0.0
      %861 = vmatprep.subr.mxu0 0.0
      %862 = vmatpush2.msra.mxu0 0.0
      %863 = vmatprep.subr.mxu0 0.0
      %864 = vmatpush2.msra.mxu0 0.0
      %865 = vmatprep.subr.mxu0 0.0
      %866 = vmatpush2.msra.mxu0 0.0
      %867 = vmatprep.subr.mxu0 0.0
      %868 = vmatpush2.msra.mxu0 0.0
      %869 = vmatprep.mubr.f32.mxu0 0.0
      %870 = vmatmul.mubr.f32.gmra.mxu0 %v554
      %v871 = vpop.f32.mrf.mxu0
      %v872 = vadd.f32 %v803, %v871
      %v873 = vpop.f32.mrf.mxu0
      %874 = vmatprep.mubr.f32.mxu0 0.0
      %875 = vmatmul.mubr.f32.gmra.mxu0 %v557
      %v876 = vpop.f32.mrf.mxu0
      %v877 = vadd.f32 %v803, %v876
      %v878 = vpop.f32.mrf.mxu0
      %879 = vmatprep.mubr.f32.mxu0 0.0
      %880 = vmatmul.mubr.f32.gmra.mxu0 %v560
      %v881 = vpop.f32.mrf.mxu0
      %v882 = vadd.f32 %v803, %v881
      %v883 = vpop.f32.mrf.mxu0
      %884 = vmatprep.mubr.f32.mxu0 0.0
      %885 = vmatmul.mubr.f32.gmra.mxu0 %v563
      %v886 = vpop.f32.mrf.mxu0
      %v887 = vadd.f32 %v803, %v886
      %v888 = vpop.f32.mrf.mxu0
      %889 = vmatprep.mubr.f32.mxu0 0.0
      %890 = vmatmul.mubr.f32.gmra.mxu0 %v566
      %v891 = vpop.f32.mrf.mxu0
      %v892 = vadd.f32 %v803, %v891
      %v893 = vpop.f32.mrf.mxu0
      %894 = vmatprep.mubr.f32.mxu0 0.0
      %895 = vmatmul.mubr.f32.gmra.mxu0 %v569
      %v896 = vpop.f32.mrf.mxu0
      %v897 = vadd.f32 %v803, %v896
      %v898 = vpop.f32.mrf.mxu0
      %899 = vmatprep.mubr.f32.mxu0 0.0
      %900 = vmatmul.mubr.f32.gmra.mxu0 %v572
      %v901 = vpop.f32.mrf.mxu0
      %v902 = vadd.f32 %v803, %v901
      %v903 = vpop.f32.mrf.mxu0
      %904 = vmatprep.mubr.f32.mxu0 0.0
      %905 = vmatmul.mubr.f32.gmra.mxu0 %v575
      %v906 = vpop.f32.mrf.mxu0
      %v907 = vadd.f32 %v803, %v906
      %v908 = vpop.f32.mrf.mxu0
      %909 = vdwg.mxu0
      %v910 = vmax.f32 %v758, %v768
      %v911 = vmax.f32 %v763, %v773
      %v912 = vmax.f32 %v872, %v882
      %v913 = vmax.f32 %v877, %v887
      %v914 = vmax.f32 %v910, %v778
      %v915 = vmax.f32 %v911, %v783
      %v916 = vmax.f32 %v912, %v892
      %v917 = vmax.f32 %v913, %v897
      %v918 = vmax.f32 %v914, %v788
      %v919 = vmax.f32 %v915, %v793
      %v920 = vmax.f32 %v916, %v902
      %v921 = vmax.f32 %v917, %v907
      %vm922 = vcmask 64512
      %v924 = vsel %vm922, %v644, 0
      %v927 = vsel %vm922, %v649, 0
      %v930 = vsel %vm922, %v654, 0
      %v933 = vsel %vm922, %v659, 0
      %v936 = vsel %vm922, %v664, 0
      %v939 = vsel %vm922, %v669, 0
      %v942 = vsel %vm922, %v674, 0
      %v945 = vsel %vm922, %v679, 0
      %v948 = vsel %vm922, %v920, 0
      %v951 = vsel %vm922, %v921, 0
      %953 = vmatprep.subr.mxu0 0.0
      %954 = vmatpush1.xpose.msra.mxu0 0.0
      %955 = vmatprep.subr.mxu0 0.0
      %956 = vmatpush1.xpose.msra.mxu0 0.0
      %957 = vmatprep.subr.mxu0 0.0
      %958 = vmatpush1.xpose.msra.mxu0 0.0
      %959 = vmatprep.subr.mxu0 0.0
      %960 = vmatpush1.xpose.msra.mxu0 0.0
      %961 = vmatprep.subr.mxu0 0.0
      %962 = vmatpush1.xpose.msra.mxu0 0.0
      %963 = vmatprep.subr.mxu0 0.0
      %964 = vmatpush1.xpose.msra.mxu0 0.0
      %965 = vmatprep.subr.mxu0 0.0
      %966 = vmatpush1.xpose.msra.mxu0 0.0
      %967 = vmatprep.subr.mxu0 0.0
      %968 = vmatpush1.xpose.msra.mxu0 0.0
      %969 = vmatprep.subr.mxu0 0.0
      %970 = vmatpush1.xpose.msra.mxu0 0.0
      %971 = vmatprep.subr.mxu0 0.0
      %972 = vmatpush1.xpose.msra.mxu0 0.0
      %973 = vmatprep.subr.mxu0 0.0
      %974 = vmatpush1.xpose.msra.mxu0 0.0
      %975 = vmatprep.subr.mxu0 0.0
      %976 = vmatpush1.xpose.msra.mxu0 0.0
      %977 = vmatprep.subr.mxu0 0.0
      %978 = vmatpush1.xpose.msra.mxu0 0.0
      %979 = vmatprep.subr.mxu0 0.0
      %980 = vmatpush1.xpose.msra.mxu0 0.0
      %981 = vmatprep.subr.mxu0 0.0
      %982 = vmatpush1.xpose.msra.mxu0 %v951
      %983 = vmatprep.subr.mxu0 0.0
      %984 = vmatpush1.xpose.msra.mxu0 %v948
      %985 = vmatprep.subr.mxu0 0.0
      %986 = vmatpush2.xpose.msra.mxu0 0.0
      %987 = vmatprep.subr.mxu0 0.0
      %988 = vmatpush2.xpose.msra.mxu0 0.0
      %989 = vmatprep.subr.mxu0 0.0
      %990 = vmatpush2.xpose.msra.mxu0 0.0
      %991 = vmatprep.subr.mxu0 0.0
      %992 = vmatpush2.xpose.msra.mxu0 0.0
      %993 = vmatprep.subr.mxu0 0.0
      %994 = vmatpush2.xpose.msra.mxu0 0.0
      %995 = vmatprep.subr.mxu0 0.0
      %996 = vmatpush2.xpose.msra.mxu0 0.0
      %997 = vmatprep.subr.mxu0 0.0
      %998 = vmatpush2.xpose.msra.mxu0 0.0
      %999 = vmatprep.subr.mxu0 0.0
      %1000 = vmatpush2.xpose.msra.mxu0 0.0
      %1001 = vmatprep.subr.mxu0 0.0
      %1002 = vmatpush2.xpose.msra.mxu0 0.0
      %1003 = vmatprep.subr.mxu0 0.0
      %1004 = vmatpush2.xpose.msra.mxu0 0.0
      %1005 = vmatprep.subr.mxu0 0.0
      %1006 = vmatpush2.xpose.msra.mxu0 0.0
      %1007 = vmatprep.subr.mxu0 0.0
      %1008 = vmatpush2.xpose.msra.mxu0 0.0
      %1009 = vmatprep.subr.mxu0 0.0
      %1010 = vmatpush2.xpose.msra.mxu0 0.0
      %1011 = vmatprep.subr.mxu0 0.0
      %1012 = vmatpush2.xpose.msra.mxu0 0.0
      %1013 = vmatprep.subr.mxu0 0.0
      %1014 = vmatpush2.xpose.msra.mxu0 0.0
      %1015 = vmatprep.subr.mxu0 0.0
      %1016 = vmatpush2.xpose.msra.mxu0 0.0
      %1017 = vmatprep.mubr.f32.mxu0 0.0
      %1018 = vmatmul.mubr.f32.gmra.mxu0 %v924
      %v1019 = vpop.f32.mrf.mxu0
      %v1020 = vadd.f32 0.0, %v1019
      %v1021 = vpop.f32.mrf.mxu0
      %1022 = vmatprep.mubr.f32.mxu0 0.0
      %1023 = vmatmul.mubr.f32.gmra.mxu0 %v927
      %v1024 = vpop.f32.mrf.mxu0
      %v1025 = vadd.f32 0.0, %v1024
      %v1026 = vpop.f32.mrf.mxu0
      %1027 = vmatprep.mubr.f32.mxu0 0.0
      %1028 = vmatmul.mubr.f32.gmra.mxu0 %v930
      %v1029 = vpop.f32.mrf.mxu0
      %v1030 = vadd.f32 0.0, %v1029
      %v1031 = vpop.f32.mrf.mxu0
      %1032 = vmatprep.mubr.f32.mxu0 0.0
      %1033 = vmatmul.mubr.f32.gmra.mxu0 %v933
      %v1034 = vpop.f32.mrf.mxu0
      %v1035 = vadd.f32 0.0, %v1034
      %v1036 = vpop.f32.mrf.mxu0
      %1037 = vmatprep.mubr.f32.mxu0 0.0
      %1038 = vmatmul.mubr.f32.gmra.mxu0 %v936
      %v1039 = vpop.f32.mrf.mxu0
      %v1040 = vadd.f32 0.0, %v1039
      %v1041 = vpop.f32.mrf.mxu0
      %1042 = vmatprep.mubr.f32.mxu0 0.0
      %1043 = vmatmul.mubr.f32.gmra.mxu0 %v939
      %v1044 = vpop.f32.mrf.mxu0
      %v1045 = vadd.f32 0.0, %v1044
      %v1046 = vpop.f32.mrf.mxu0
      %1047 = vmatprep.mubr.f32.mxu0 0.0
      %1048 = vmatmul.mubr.f32.gmra.mxu0 %v942
      %v1049 = vpop.f32.mrf.mxu0
      %v1050 = vadd.f32 0.0, %v1049
      %v1051 = vpop.f32.mrf.mxu0
      %1052 = vmatprep.mubr.f32.mxu0 0.0
      %1053 = vmatmul.mubr.f32.gmra.mxu0 %v945
      %v1054 = vpop.f32.mrf.mxu0
      %v1055 = vadd.f32 0.0, %v1054
      %v1056 = vpop.f32.mrf.mxu0
      %1057 = vdwg.mxu0
      %v1058 = vsel %vm552, %v1020, -inf
      %1059 = vmax.xlane.f32.xlu0 %v1058
      %v1060 = vpop.xlane.xlu0 %1059
      %v1061 = vsel %vm552, %v1025, -inf
      %1062 = vmax.xlane.f32.xlu0 %v1061
      %v1063 = vpop.xlane.xlu0 %1062
      %v1064 = vsel %vm552, %v1030, -inf
      %1065 = vmax.xlane.f32.xlu0 %v1064
      %v1066 = vpop.xlane.xlu0 %1065
      %v1067 = vsel %vm552, %v1035, -inf
      %1068 = vmax.xlane.f32.xlu0 %v1067
      %v1069 = vpop.xlane.xlu0 %1068
      %v1070 = vsel %vm552, %v1040, -inf
      %1071 = vmax.xlane.f32.xlu0 %v1070
      %v1072 = vpop.xlane.xlu0 %1071
      %v1073 = vsel %vm552, %v1045, -inf
      %1074 = vmax.xlane.f32.xlu0 %v1073
      %v1075 = vpop.xlane.xlu0 %1074
      %v1076 = vsel %vm552, %v1050, -inf
      %1077 = vmax.xlane.f32.xlu0 %v1076
      %v1078 = vpop.xlane.xlu0 %1077
      %v1079 = vsel %vm552, %v1055, -inf
      %1080 = vmax.xlane.f32.xlu0 %v1079
      %v1081 = vpop.xlane.xlu0 %1080
      %v1082 = vsub.f32 %v1020, %v1060
      %v1083 = vsub.f32 %v1025, %v1063
      %v1084 = vsub.f32 %v1030, %v1066
      %v1085 = vsub.f32 %v1035, %v1069
      %v1086 = vsub.f32 %v1040, %v1072
      %v1087 = vsub.f32 %v1045, %v1075
      %v1088 = vsub.f32 %v1050, %v1078
      %v1089 = vsub.f32 %v1055, %v1081
      %v1090 = vmul.f32 %v1082, 1.442695
      %v1091 = vpow.pop %v1090
      %v1092 = vmul.f32 %v1083, 1.442695
      %v1093 = vpow.pop %v1092
      %v1094 = vmul.f32 %v1084, 1.442695
      %v1095 = vpow.pop %v1094
      %v1096 = vmul.f32 %v1085, 1.442695
      %v1097 = vpow.pop %v1096
      %v1098 = vmul.f32 %v1086, 1.442695
      %v1099 = vpow.pop %v1098
      %v1100 = vmul.f32 %v1087, 1.442695
      %v1101 = vpow.pop %v1100
      %v1102 = vmul.f32 %v1088, 1.442695
      %v1103 = vpow.pop %v1102
      %v1104 = vmul.f32 %v1089, 1.442695
      %v1105 = vpow.pop %v1104
      %v1106 = vsel %vm552, %v1091, 0.0
      %1107 = vadd.xlane.f32.xlu0 %v1106
      %v1108 = vpop.xlane.xlu0 %1107
      %v1109 = vsel %vm552, %v1093, 0.0
      %1110 = vadd.xlane.f32.xlu0 %v1109
      %v1111 = vpop.xlane.xlu0 %1110
      %v1112 = vsel %vm552, %v1095, 0.0
      %1113 = vadd.xlane.f32.xlu0 %v1112
      %v1114 = vpop.xlane.xlu0 %1113
      %v1115 = vsel %vm552, %v1097, 0.0
      %1116 = vadd.xlane.f32.xlu0 %v1115
      %v1117 = vpop.xlane.xlu0 %1116
      %v1118 = vsel %vm552, %v1099, 0.0
      %1119 = vadd.xlane.f32.xlu0 %v1118
      %v1120 = vpop.xlane.xlu0 %1119
      %v1121 = vsel %vm552, %v1101, 0.0
      %1122 = vadd.xlane.f32.xlu0 %v1121
      %v1123 = vpop.xlane.xlu0 %1122
      %v1124 = vsel %vm552, %v1103, 0.0
      %1125 = vadd.xlane.f32.xlu0 %v1124
      %v1126 = vpop.xlane.xlu0 %1125
      %v1127 = vsel %vm552, %v1105, 0.0
      %1128 = vadd.xlane.f32.xlu0 %v1127
      %v1129 = vpop.xlane.xlu0 %1128
      %v1130 = vrcp.pop %v1108
      %v1131 = vrcp.pop %v1111
      %v1132 = vrcp.pop %v1114
      %v1133 = vrcp.pop %v1117
      %v1134 = vrcp.pop %v1120
      %v1135 = vrcp.pop %v1123
      %v1136 = vrcp.pop %v1126
      %v1137 = vrcp.pop %v1129
      %v1138 = vmul.f32 %v1091, %v1130
      %v1139 = vmul.f32 %v1093, %v1131
      %v1140 = vmul.f32 %v1095, %v1132
      %v1141 = vmul.f32 %v1097, %v1133
      %v1142 = vmul.f32 %v1099, %v1134
      %v1143 = vmul.f32 %v1101, %v1135
      %v1144 = vmul.f32 %v1103, %v1136
      %v1145 = vmul.f32 %v1105, %v1137
      %v1147 = vsel %vm552, %v1138, 0
      %v1150 = vsel %vm552, %v1139, 0
      %v1153 = vsel %vm552, %v1140, 0
      %v1156 = vsel %vm552, %v1141, 0
      %v1159 = vsel %vm552, %v1142, 0
      %v1162 = vsel %vm552, %v1143, 0
      %v1165 = vsel %vm552, %v1144, 0
      %v1168 = vsel %vm552, %v1145, 0
      %1170 = vmatprep.subr.mxu0 0.0
      %1171 = vmatpush1.msra.mxu0 0.0
      %1172 = vmatprep.subr.mxu0 0.0
      %1173 = vmatpush1.msra.mxu0 0.0
      %1174 = vmatprep.subr.mxu0 0.0
      %1175 = vmatpush1.msra.mxu0 0.0
      %1176 = vmatprep.subr.mxu0 0.0
      %1177 = vmatpush1.msra.mxu0 0.0
      %1178 = vmatprep.subr.mxu0 0.0
      %1179 = vmatpush1.msra.mxu0 0.0
      %1180 = vmatprep.subr.mxu0 0.0
      %1181 = vmatpush1.msra.mxu0 0.0
      %1182 = vmatprep.subr.mxu0 0.0
      %1183 = vmatpush1.msra.mxu0 0.0
      %1184 = vmatprep.subr.mxu0 0.0
      %1185 = vmatpush1.msra.mxu0 0.0
      %1186 = vmatprep.subr.mxu0 0.0
      %1187 = vmatpush1.msra.mxu0 0.0
      %1188 = vmatprep.subr.mxu0 0.0
      %1189 = vmatpush1.msra.mxu0 0.0
      %1190 = vmatprep.subr.mxu0 0.0
      %1191 = vmatpush1.msra.mxu0 0.0
      %1192 = vmatprep.subr.mxu0 0.0
      %1193 = vmatpush1.msra.mxu0 0.0
      %1194 = vmatprep.subr.mxu0 0.0
      %1195 = vmatpush1.msra.mxu0 0.0
      %1196 = vmatprep.subr.mxu0 0.0
      %1197 = vmatpush1.msra.mxu0 0.0
      %1198 = vmatprep.subr.mxu0 0.0
      %1199 = vmatpush1.msra.mxu0 %v919
      %1200 = vmatprep.subr.mxu0 0.0
      %1201 = vmatpush1.msra.mxu0 %v918
      %1202 = vmatprep.subr.mxu0 0.0
      %1203 = vmatpush2.msra.mxu0 0.0
      %1204 = vmatprep.subr.mxu0 0.0
      %1205 = vmatpush2.msra.mxu0 0.0
      %1206 = vmatprep.subr.mxu0 0.0
      %1207 = vmatpush2.msra.mxu0 0.0
      %1208 = vmatprep.subr.mxu0 0.0
      %1209 = vmatpush2.msra.mxu0 0.0
      %1210 = vmatprep.subr.mxu0 0.0
      %1211 = vmatpush2.msra.mxu0 0.0
      %1212 = vmatprep.subr.mxu0 0.0
      %1213 = vmatpush2.msra.mxu0 0.0
      %1214 = vmatprep.subr.mxu0 0.0
      %1215 = vmatpush2.msra.mxu0 0.0
      %1216 = vmatprep.subr.mxu0 0.0
      %1217 = vmatpush2.msra.mxu0 0.0
      %1218 = vmatprep.subr.mxu0 0.0
      %1219 = vmatpush2.msra.mxu0 0.0
      %1220 = vmatprep.subr.mxu0 0.0
      %1221 = vmatpush2.msra.mxu0 0.0
      %1222 = vmatprep.subr.mxu0 0.0
      %1223 = vmatpush2.msra.mxu0 0.0
      %1224 = vmatprep.subr.mxu0 0.0
      %1225 = vmatpush2.msra.mxu0 0.0
      %1226 = vmatprep.subr.mxu0 0.0
      %1227 = vmatpush2.msra.mxu0 0.0
      %1228 = vmatprep.subr.mxu0 0.0
      %1229 = vmatpush2.msra.mxu0 0.0
      %1230 = vmatprep.subr.mxu0 0.0
      %1231 = vmatpush2.msra.mxu0 0.0
      %1232 = vmatprep.subr.mxu0 0.0
      %1233 = vmatpush2.msra.mxu0 0.0
      %1234 = vmatprep.mubr.f32.mxu0 0.0
      %1235 = vmatmul.mubr.f32.gmra.mxu0 %v1147
      %v1236 = vpop.f32.mrf.mxu0
      %v1237 = vadd.f32 0.0, %v1236
      %v1238 = vpop.f32.mrf.mxu0
      %1239 = vmatprep.mubr.f32.mxu0 0.0
      %1240 = vmatmul.mubr.f32.gmra.mxu0 %v1150
      %v1241 = vpop.f32.mrf.mxu0
      %v1242 = vadd.f32 0.0, %v1241
      %v1243 = vpop.f32.mrf.mxu0
      %1244 = vmatprep.mubr.f32.mxu0 0.0
      %1245 = vmatmul.mubr.f32.gmra.mxu0 %v1153
      %v1246 = vpop.f32.mrf.mxu0
      %v1247 = vadd.f32 0.0, %v1246
      %v1248 = vpop.f32.mrf.mxu0
      %1249 = vmatprep.mubr.f32.mxu0 0.0
      %1250 = vmatmul.mubr.f32.gmra.mxu0 %v1156
      %v1251 = vpop.f32.mrf.mxu0
      %v1252 = vadd.f32 0.0, %v1251
      %v1253 = vpop.f32.mrf.mxu0
      %1254 = vmatprep.mubr.f32.mxu0 0.0
      %1255 = vmatmul.mubr.f32.gmra.mxu0 %v1159
      %v1256 = vpop.f32.mrf.mxu0
      %v1257 = vadd.f32 0.0, %v1256
      %v1258 = vpop.f32.mrf.mxu0
      %1259 = vmatprep.mubr.f32.mxu0 0.0
      %1260 = vmatmul.mubr.f32.gmra.mxu0 %v1162
      %v1261 = vpop.f32.mrf.mxu0
      %v1262 = vadd.f32 0.0, %v1261
      %v1263 = vpop.f32.mrf.mxu0
      %1264 = vmatprep.mubr.f32.mxu0 0.0
      %1265 = vmatmul.mubr.f32.gmra.mxu0 %v1165
      %v1266 = vpop.f32.mrf.mxu0
      %v1267 = vadd.f32 0.0, %v1266
      %v1268 = vpop.f32.mrf.mxu0
      %1269 = vmatprep.mubr.f32.mxu0 0.0
      %1270 = vmatmul.mubr.f32.gmra.mxu0 %v1168
      %v1271 = vpop.f32.mrf.mxu0
      %v1272 = vadd.f32 0.0, %v1271
      %v1273 = vpop.f32.mrf.mxu0
      %1274 = vdwg.mxu0
      %v1275 = vld [vmem:[%s9] sm:$0xff]
      %v1276 = vld [vmem:[%s10] sm:$0x1]
      %v1278 = vlaneseq
      %v1279 = vshrl.u32 %v1278, 7
      %v1280 = vsub.s32 0, %v1279
      %v1281 = vrot.slane %v1276, %v1280
      %v1284 = vsel %vm922, %v1237, 0
      %v1287 = vsel %vm922, %v1242, 0
      %v1290 = vsel %vm922, %v1247, 0
      %v1293 = vsel %vm922, %v1252, 0
      %v1296 = vsel %vm922, %v1257, 0
      %v1299 = vsel %vm922, %v1262, 0
      %v1302 = vsel %vm922, %v1267, 0
      %v1305 = vsel %vm922, %v1272, 0
      %1307 = vmatprep.subr.mxu0 0.0
      %1308 = vmatpush1.msra.mxu0 0.0
      %1309 = vmatprep.subr.mxu0 0.0
      %1310 = vmatpush1.msra.mxu0 0.0
      %1311 = vmatprep.subr.mxu0 0.0
      %1312 = vmatpush1.msra.mxu0 0.0
      %1313 = vmatprep.subr.mxu0 0.0
      %1314 = vmatpush1.msra.mxu0 0.0
      %1315 = vmatprep.subr.mxu0 0.0
      %1316 = vmatpush1.msra.mxu0 0.0
      %1317 = vmatprep.subr.mxu0 0.0
      %1318 = vmatpush1.msra.mxu0 0.0
      %1319 = vmatprep.subr.mxu0 0.0
      %1320 = vmatpush1.msra.mxu0 0.0
      %1321 = vmatprep.subr.mxu0 0.0
      %1322 = vmatpush1.msra.mxu0 0.0
      %1323 = vmatprep.subr.mxu0 0.0
      %1324 = vmatpush1.msra.mxu0 0.0
      %1325 = vmatprep.subr.mxu0 0.0
      %1326 = vmatpush1.msra.mxu0 0.0
      %1327 = vmatprep.subr.mxu0 0.0
      %1328 = vmatpush1.msra.mxu0 0.0
      %1329 = vmatprep.subr.mxu0 0.0
      %1330 = vmatpush1.msra.mxu0 0.0
      %1331 = vmatprep.subr.mxu0 0.0
      %1332 = vmatpush1.msra.mxu0 0.0
      %1333 = vmatprep.subr.mxu0 0.0
      %1334 = vmatpush1.msra.mxu0 0.0
      %1335 = vmatprep.subr.mxu0 0.0
      %1336 = vmatpush1.msra.mxu0 0.0
      %1337 = vmatprep.subr.mxu0 0.0
      %1338 = vmatpush1.msra.mxu0 %v1275
      %1339 = vmatprep.subr.mxu0 0.0
      %1340 = vmatpush2.msra.mxu0 0.0
      %1341 = vmatprep.subr.mxu0 0.0
      %1342 = vmatpush2.msra.mxu0 0.0
      %1343 = vmatprep.subr.mxu0 0.0
      %1344 = vmatpush2.msra.mxu0 0.0
      %1345 = vmatprep.subr.mxu0 0.0
      %1346 = vmatpush2.msra.mxu0 0.0
      %1347 = vmatprep.subr.mxu0 0.0
      %1348 = vmatpush2.msra.mxu0 0.0
      %1349 = vmatprep.subr.mxu0 0.0
      %1350 = vmatpush2.msra.mxu0 0.0
      %1351 = vmatprep.subr.mxu0 0.0
      %1352 = vmatpush2.msra.mxu0 0.0
      %1353 = vmatprep.subr.mxu0 0.0
      %1354 = vmatpush2.msra.mxu0 0.0
      %1355 = vmatprep.subr.mxu0 0.0
      %1356 = vmatpush2.msra.mxu0 0.0
      %1357 = vmatprep.subr.mxu0 0.0
      %1358 = vmatpush2.msra.mxu0 0.0
      %1359 = vmatprep.subr.mxu0 0.0
      %1360 = vmatpush2.msra.mxu0 0.0
      %1361 = vmatprep.subr.mxu0 0.0
      %1362 = vmatpush2.msra.mxu0 0.0
      %1363 = vmatprep.subr.mxu0 0.0
      %1364 = vmatpush2.msra.mxu0 0.0
      %1365 = vmatprep.subr.mxu0 0.0
      %1366 = vmatpush2.msra.mxu0 0.0
      %1367 = vmatprep.subr.mxu0 0.0
      %1368 = vmatpush2.msra.mxu0 0.0
      %1369 = vmatprep.subr.mxu0 0.0
      %1370 = vmatpush2.msra.mxu0 0.0
      %1371 = vmatprep.mubr.f32.mxu0 0.0
      %1372 = vmatmul.mubr.f32.gmra.mxu0 %v1284
      %v1373 = vpop.f32.mrf.mxu0
      %v1374 = vadd.f32 %v1281, %v1373
      %v1375 = vpop.f32.mrf.mxu0
      %1376 = vmatprep.mubr.f32.mxu0 0.0
      %1377 = vmatmul.mubr.f32.gmra.mxu0 %v1287
      %v1378 = vpop.f32.mrf.mxu0
      %v1379 = vadd.f32 %v1281, %v1378
      %v1380 = vpop.f32.mrf.mxu0
      %1381 = vmatprep.mubr.f32.mxu0 0.0
      %1382 = vmatmul.mubr.f32.gmra.mxu0 %v1290
      %v1383 = vpop.f32.mrf.mxu0
      %v1384 = vadd.f32 %v1281, %v1383
      %v1385 = vpop.f32.mrf.mxu0
      %1386 = vmatprep.mubr.f32.mxu0 0.0
      %1387 = vmatmul.mubr.f32.gmra.mxu0 %v1293
      %v1388 = vpop.f32.mrf.mxu0
      %v1389 = vadd.f32 %v1281, %v1388
      %v1390 = vpop.f32.mrf.mxu0
      %1391 = vmatprep.mubr.f32.mxu0 0.0
      %1392 = vmatmul.mubr.f32.gmra.mxu0 %v1296
      %v1393 = vpop.f32.mrf.mxu0
      %v1394 = vadd.f32 %v1281, %v1393
      %v1395 = vpop.f32.mrf.mxu0
      %1396 = vmatprep.mubr.f32.mxu0 0.0
      %1397 = vmatmul.mubr.f32.gmra.mxu0 %v1299
      %v1398 = vpop.f32.mrf.mxu0
      %v1399 = vadd.f32 %v1281, %v1398
      %v1400 = vpop.f32.mrf.mxu0
      %1401 = vmatprep.mubr.f32.mxu0 0.0
      %1402 = vmatmul.mubr.f32.gmra.mxu0 %v1302
      %v1403 = vpop.f32.mrf.mxu0
      %v1404 = vadd.f32 %v1281, %v1403
      %v1405 = vpop.f32.mrf.mxu0
      %1406 = vmatprep.mubr.f32.mxu0 0.0
      %1407 = vmatmul.mubr.f32.gmra.mxu0 %v1305
      %v1408 = vpop.f32.mrf.mxu0
      %v1409 = vadd.f32 %v1281, %v1408
      %v1410 = vpop.f32.mrf.mxu0
      %1411 = vdwg.mxu0
      %v1412 = vld [vmem:[%s11] sm:$0x1]
      %v1414 = vlaneseq
      %v1415 = vshrl.u32 %v1414, 7
      %v1416 = vsub.s32 0, %v1415
      %v1417 = vrot.slane %v1412, %v1416
      %v1419 = vmul.f32 %v1374, %v1417
      %v1420 = vmul.f32 %v1379, %v1417
      %v1421 = vmul.f32 %v1384, %v1417
      %v1422 = vmul.f32 %v1389, %v1417
      %v1423 = vmul.f32 %v1394, %v1417
      %v1424 = vmul.f32 %v1399, %v1417
      %v1425 = vmul.f32 %v1404, %v1417
      %v1426 = vmul.f32 %v1409, %v1417
      %v1427 = vld [vmem:[%s12] sm:$0x1]
      %v1429 = vlaneseq
      %v1430 = vshrl.u32 %v1429, 7
      %v1431 = vsub.s32 0, %v1430
      %v1432 = vrot.slane %v1427, %v1431
      %v1434 = vadd.f32 %v1419, %v1432
      %v1435 = vadd.f32 %v1420, %v1432
      %v1436 = vadd.f32 %v1421, %v1432
      %v1437 = vadd.f32 %v1422, %v1432
      %v1438 = vadd.f32 %v1423, %v1432
      %v1439 = vadd.f32 %v1424, %v1432
      %v1440 = vadd.f32 %v1425, %v1432
      %v1441 = vadd.f32 %v1426, %v1432
      %v1442 = vadd.f32 %v1434, %v535
      %v1443 = vadd.f32 %v1435, %v536
      %v1444 = vadd.f32 %v1436, %v537
      %v1445 = vadd.f32 %v1437, %v538
      %v1446 = vadd.f32 %v1438, %v539
      %v1447 = vadd.f32 %v1439, %v540
      %v1448 = vadd.f32 %v1440, %v541
      %v1449 = vadd.f32 %v1441, %v542
      %v1450 = vld [vmem:[%s519] sm:$0xff]
      %v1451 = vld [vmem:[%s519 + $0x8] sm:$0xff]
      %v1452 = vld [vmem:[%s519 + $0x10] sm:$0xff]
      %v1453 = vld [vmem:[%s519 + $0x18] sm:$0xff]
      %v1454 = vld [vmem:[%s519 + $0x20] sm:$0xff]
      %v1455 = vld [vmem:[%s519 + $0x28] sm:$0xff]
      %v1456 = vld [vmem:[%s519 + $0x30] sm:$0xff]
      %v1457 = vld [vmem:[%s519 + $0x38] sm:$0xff]
      %v1458 = vld [vmem:[%s529] sm:$0xff]
      %v1459 = vld [vmem:[%s529 + $0x8] sm:$0xff]
      %v1460 = vld [vmem:[%s529 + $0x10] sm:$0xff]
      %v1461 = vld [vmem:[%s529 + $0x18] sm:$0xff]
      %v1462 = vld [vmem:[%s529 + $0x20] sm:$0xff]
      %v1463 = vld [vmem:[%s529 + $0x28] sm:$0xff]
      %v1464 = vld [vmem:[%s529 + $0x30] sm:$0xff]
      %v1465 = vld [vmem:[%s529 + $0x38] sm:$0xff]
      %v1466 = vsel %vm552, %v1450, 0.0
      %v1467 = vsel %vm552, %v1451, 0.0
      %v1468 = vadd.f32 %v1466, %v1467
      %v1469 = vsel %vm552, %v1452, 0.0
      %v1470 = vadd.f32 %v1468, %v1469
      %v1471 = vsel %vm552, %v1453, 0.0
      %v1472 = vadd.f32 %v1470, %v1471
      %v1473 = vsel %vm552, %v1454, 0.0
      %v1474 = vadd.f32 %v1472, %v1473
      %v1475 = vsel %vm552, %v1455, 0.0
      %v1476 = vadd.f32 %v1474, %v1475
      %v1477 = vsel %vm552, %v1456, 0.0
      %v1478 = vadd.f32 %v1476, %v1477
      %v1479 = vsel %vm552, %v1457, 0.0
      %v1480 = vadd.f32 %v1478, %v1479
      %v1481 = vrot.slane %v1480, 4
      %v1482 = vadd.f32 %v1480, %v1481
      %v1483 = vrot.slane %v1482, 2
      %v1484 = vadd.f32 %v1482, %v1483
      %v1485 = vrot.slane %v1484, 1
      %v1486 = vadd.f32 %v1484, %v1485
      %v1487 = vmul.f32 %v1486, 0.015625
      %v1488 = vsel %vm552, %v1442, 0.0
      %v1489 = vsel %vm552, %v1443, 0.0
      %v1490 = vadd.f32 %v1488, %v1489
      %v1491 = vsel %vm552, %v1444, 0.0
      %v1492 = vadd.f32 %v1490, %v1491
      %v1493 = vsel %vm552, %v1445, 0.0
      %v1494 = vadd.f32 %v1492, %v1493
      %v1495 = vsel %vm552, %v1446, 0.0
      %v1496 = vadd.f32 %v1494, %v1495
      %v1497 = vsel %vm552, %v1447, 0.0
      %v1498 = vadd.f32 %v1496, %v1497
      %v1499 = vsel %vm552, %v1448, 0.0
      %v1500 = vadd.f32 %v1498, %v1499
      %v1501 = vsel %vm552, %v1449, 0.0
      %v1502 = vadd.f32 %v1500, %v1501
      %v1503 = vrot.slane %v1502, 4
      %v1504 = vadd.f32 %v1502, %v1503
      %v1505 = vrot.slane %v1504, 2
      %v1506 = vadd.f32 %v1504, %v1505
      %v1507 = vrot.slane %v1506, 1
      %v1508 = vadd.f32 %v1506, %v1507
      %v1509 = vmul.f32 %v1508, 0.015625
      %v1510 = vsel %vm552, %v1458, 0.0
      %v1511 = vsel %vm552, %v1459, 0.0
      %v1512 = vadd.f32 %v1510, %v1511
      %v1513 = vsel %vm552, %v1460, 0.0
      %v1514 = vadd.f32 %v1512, %v1513
      %v1515 = vsel %vm552, %v1461, 0.0
      %v1516 = vadd.f32 %v1514, %v1515
      %v1517 = vsel %vm552, %v1462, 0.0
      %v1518 = vadd.f32 %v1516, %v1517
      %v1519 = vsel %vm552, %v1463, 0.0
      %v1520 = vadd.f32 %v1518, %v1519
      %v1521 = vsel %vm552, %v1464, 0.0
      %v1522 = vadd.f32 %v1520, %v1521
      %v1523 = vsel %vm552, %v1465, 0.0
      %v1524 = vadd.f32 %v1522, %v1523
      %v1525 = vrot.slane %v1524, 4
      %v1526 = vadd.f32 %v1524, %v1525
      %v1527 = vrot.slane %v1526, 2
      %v1528 = vadd.f32 %v1526, %v1527
      %v1529 = vrot.slane %v1528, 1
      %v1530 = vadd.f32 %v1528, %v1529
      %v1531 = vmul.f32 %v1530, 0.015625
      %v1532 = vld [vmem:[%s13] sm:$0xff]
      %v1533 = vld [vmem:[%s13 + $0x8] sm:$0xff]
      %v1534 = vld [vmem:[%s13 + $0x10] sm:$0xff]
      %v1535 = vld [vmem:[%s13 + $0x18] sm:$0xff]
      %v1537 = vsel %vm552, %v1509, 0
      %1539 = vmatprep.subr.mxu0 0.0
      %1540 = vmatpush1.msra.mxu0 0.0
      %1541 = vmatprep.subr.mxu0 0.0
      %1542 = vmatpush1.msra.mxu0 0.0
      %1543 = vmatprep.subr.mxu0 0.0
      %1544 = vmatpush1.msra.mxu0 0.0
      %1545 = vmatprep.subr.mxu0 0.0
      %1546 = vmatpush1.msra.mxu0 0.0
      %1547 = vmatprep.subr.mxu0 0.0
      %1548 = vmatpush1.msra.mxu0 0.0
      %1549 = vmatprep.subr.mxu0 0.0
      %1550 = vmatpush1.msra.mxu0 0.0
      %1551 = vmatprep.subr.mxu0 0.0
      %1552 = vmatpush1.msra.mxu0 0.0
      %1553 = vmatprep.subr.mxu0 0.0
      %1554 = vmatpush1.msra.mxu0 0.0
      %1555 = vmatprep.subr.mxu0 0.0
      %1556 = vmatpush1.msra.mxu0 0.0
      %1557 = vmatprep.subr.mxu0 0.0
      %1558 = vmatpush1.msra.mxu0 0.0
      %1559 = vmatprep.subr.mxu0 0.0
      %1560 = vmatpush1.msra.mxu0 0.0
      %1561 = vmatprep.subr.mxu0 0.0
      %1562 = vmatpush1.msra.mxu0 0.0
      %1563 = vmatprep.subr.mxu0 0.0
      %1564 = vmatpush1.msra.mxu0 0.0
      %1565 = vmatprep.subr.mxu0 0.0
      %1566 = vmatpush1.msra.mxu0 0.0
      %1567 = vmatprep.subr.mxu0 0.0
      %1568 = vmatpush1.msra.mxu0 %v1535
      %1569 = vmatprep.subr.mxu0 0.0
      %1570 = vmatpush1.msra.mxu0 %v1534
      %1571 = vmatprep.subr.mxu0 0.0
      %1572 = vmatpush2.msra.mxu0 0.0
      %1573 = vmatprep.subr.mxu0 0.0
      %1574 = vmatpush2.msra.mxu0 0.0
      %1575 = vmatprep.subr.mxu0 0.0
      %1576 = vmatpush2.msra.mxu0 0.0
      %1577 = vmatprep.subr.mxu0 0.0
      %1578 = vmatpush2.msra.mxu0 0.0
      %1579 = vmatprep.subr.mxu0 0.0
      %1580 = vmatpush2.msra.mxu0 0.0
      %1581 = vmatprep.subr.mxu0 0.0
      %1582 = vmatpush2.msra.mxu0 0.0
      %1583 = vmatprep.subr.mxu0 0.0
      %1584 = vmatpush2.msra.mxu0 0.0
      %1585 = vmatprep.subr.mxu0 0.0
      %1586 = vmatpush2.msra.mxu0 0.0
      %1587 = vmatprep.subr.mxu0 0.0
      %1588 = vmatpush2.msra.mxu0 0.0
      %1589 = vmatprep.subr.mxu0 0.0
      %1590 = vmatpush2.msra.mxu0 0.0
      %1591 = vmatprep.subr.mxu0 0.0
      %1592 = vmatpush2.msra.mxu0 0.0
      %1593 = vmatprep.subr.mxu0 0.0
      %1594 = vmatpush2.msra.mxu0 0.0
      %1595 = vmatprep.subr.mxu0 0.0
      %1596 = vmatpush2.msra.mxu0 0.0
      %1597 = vmatprep.subr.mxu0 0.0
      %1598 = vmatpush2.msra.mxu0 0.0
      %1599 = vmatprep.subr.mxu0 0.0
      %1600 = vmatpush2.msra.mxu0 0.0
      %1601 = vmatprep.subr.mxu0 0.0
      %1602 = vmatpush2.msra.mxu0 0.0
      %1603 = vmatprep.mubr.f32.mxu0 0.0
      %1604 = vmatmul.mubr.f32.gmra.mxu0 %v1537
      %v1605 = vpop.f32.mrf.mxu0
      %v1606 = vadd.f32 0.0, %v1605
      %v1607 = vpop.f32.mrf.mxu0
      %1608 = vdwg.mxu0
      %v1610 = vsel %vm552, %v1487, 0
      %1612 = vmatprep.subr.mxu0 0.0
      %1613 = vmatpush1.msra.mxu0 0.0
      %1614 = vmatprep.subr.mxu0 0.0
      %1615 = vmatpush1.msra.mxu0 0.0
      %1616 = vmatprep.subr.mxu0 0.0
      %1617 = vmatpush1.msra.mxu0 0.0
      %1618 = vmatprep.subr.mxu0 0.0
      %1619 = vmatpush1.msra.mxu0 0.0
      %1620 = vmatprep.subr.mxu0 0.0
      %1621 = vmatpush1.msra.mxu0 0.0
      %1622 = vmatprep.subr.mxu0 0.0
      %1623 = vmatpush1.msra.mxu0 0.0
      %1624 = vmatprep.subr.mxu0 0.0
      %1625 = vmatpush1.msra.mxu0 0.0
      %1626 = vmatprep.subr.mxu0 0.0
      %1627 = vmatpush1.msra.mxu0 0.0
      %1628 = vmatprep.subr.mxu0 0.0
      %1629 = vmatpush1.msra.mxu0 0.0
      %1630 = vmatprep.subr.mxu0 0.0
      %1631 = vmatpush1.msra.mxu0 0.0
      %1632 = vmatprep.subr.mxu0 0.0
      %1633 = vmatpush1.msra.mxu0 0.0
      %1634 = vmatprep.subr.mxu0 0.0
      %1635 = vmatpush1.msra.mxu0 0.0
      %1636 = vmatprep.subr.mxu0 0.0
      %1637 = vmatpush1.msra.mxu0 0.0
      %1638 = vmatprep.subr.mxu0 0.0
      %1639 = vmatpush1.msra.mxu0 0.0
      %1640 = vmatprep.subr.mxu0 0.0
      %1641 = vmatpush1.msra.mxu0 %v1533
      %1642 = vmatprep.subr.mxu0 0.0
      %1643 = vmatpush1.msra.mxu0 %v1532
      %1644 = vmatprep.subr.mxu0 0.0
      %1645 = vmatpush2.msra.mxu0 0.0
      %1646 = vmatprep.subr.mxu0 0.0
      %1647 = vmatpush2.msra.mxu0 0.0
      %1648 = vmatprep.subr.mxu0 0.0
      %1649 = vmatpush2.msra.mxu0 0.0
      %1650 = vmatprep.subr.mxu0 0.0
      %1651 = vmatpush2.msra.mxu0 0.0
      %1652 = vmatprep.subr.mxu0 0.0
      %1653 = vmatpush2.msra.mxu0 0.0
      %1654 = vmatprep.subr.mxu0 0.0
      %1655 = vmatpush2.msra.mxu0 0.0
      %1656 = vmatprep.subr.mxu0 0.0
      %1657 = vmatpush2.msra.mxu0 0.0
      %1658 = vmatprep.subr.mxu0 0.0
      %1659 = vmatpush2.msra.mxu0 0.0
      %1660 = vmatprep.subr.mxu0 0.0
      %1661 = vmatpush2.msra.mxu0 0.0
      %1662 = vmatprep.subr.mxu0 0.0
      %1663 = vmatpush2.msra.mxu0 0.0
      %1664 = vmatprep.subr.mxu0 0.0
      %1665 = vmatpush2.msra.mxu0 0.0
      %1666 = vmatprep.subr.mxu0 0.0
      %1667 = vmatpush2.msra.mxu0 0.0
      %1668 = vmatprep.subr.mxu0 0.0
      %1669 = vmatpush2.msra.mxu0 0.0
      %1670 = vmatprep.subr.mxu0 0.0
      %1671 = vmatpush2.msra.mxu0 0.0
      %1672 = vmatprep.subr.mxu0 0.0
      %1673 = vmatpush2.msra.mxu0 0.0
      %1674 = vmatprep.subr.mxu0 0.0
      %1675 = vmatpush2.msra.mxu0 0.0
      %1676 = vmatprep.mubr.f32.mxu0 0.0
      %1677 = vmatmul.mubr.f32.gmra.mxu0 %v1610
      %v1678 = vpop.f32.mrf.mxu0
      %v1679 = vadd.f32 %v1606, %v1678
      %v1680 = vpop.f32.mrf.mxu0
      %1681 = vdwg.mxu0
      %v1682 = vld [vmem:[%s13 + $0x20] sm:$0xff]
      %v1683 = vld [vmem:[%s13 + $0x28] sm:$0xff]
      %v1685 = vsel %vm552, %v1531, 0
      %1687 = vmatprep.subr.mxu0 0.0
      %1688 = vmatpush1.msra.mxu0 0.0
      %1689 = vmatprep.subr.mxu0 0.0
      %1690 = vmatpush1.msra.mxu0 0.0
      %1691 = vmatprep.subr.mxu0 0.0
      %1692 = vmatpush1.msra.mxu0 0.0
      %1693 = vmatprep.subr.mxu0 0.0
      %1694 = vmatpush1.msra.mxu0 0.0
      %1695 = vmatprep.subr.mxu0 0.0
      %1696 = vmatpush1.msra.mxu0 0.0
      %1697 = vmatprep.subr.mxu0 0.0
      %1698 = vmatpush1.msra.mxu0 0.0
      %1699 = vmatprep.subr.mxu0 0.0
      %1700 = vmatpush1.msra.mxu0 0.0
      %1701 = vmatprep.subr.mxu0 0.0
      %1702 = vmatpush1.msra.mxu0 0.0
      %1703 = vmatprep.subr.mxu0 0.0
      %1704 = vmatpush1.msra.mxu0 0.0
      %1705 = vmatprep.subr.mxu0 0.0
      %1706 = vmatpush1.msra.mxu0 0.0
      %1707 = vmatprep.subr.mxu0 0.0
      %1708 = vmatpush1.msra.mxu0 0.0
      %1709 = vmatprep.subr.mxu0 0.0
      %1710 = vmatpush1.msra.mxu0 0.0
      %1711 = vmatprep.subr.mxu0 0.0
      %1712 = vmatpush1.msra.mxu0 0.0
      %1713 = vmatprep.subr.mxu0 0.0
      %1714 = vmatpush1.msra.mxu0 0.0
      %1715 = vmatprep.subr.mxu0 0.0
      %1716 = vmatpush1.msra.mxu0 %v1683
      %1717 = vmatprep.subr.mxu0 0.0
      %1718 = vmatpush1.msra.mxu0 %v1682
      %1719 = vmatprep.subr.mxu0 0.0
      %1720 = vmatpush2.msra.mxu0 0.0
      %1721 = vmatprep.subr.mxu0 0.0
      %1722 = vmatpush2.msra.mxu0 0.0
      %1723 = vmatprep.subr.mxu0 0.0
      %1724 = vmatpush2.msra.mxu0 0.0
      %1725 = vmatprep.subr.mxu0 0.0
      %1726 = vmatpush2.msra.mxu0 0.0
      %1727 = vmatprep.subr.mxu0 0.0
      %1728 = vmatpush2.msra.mxu0 0.0
      %1729 = vmatprep.subr.mxu0 0.0
      %1730 = vmatpush2.msra.mxu0 0.0
      %1731 = vmatprep.subr.mxu0 0.0
      %1732 = vmatpush2.msra.mxu0 0.0
      %1733 = vmatprep.subr.mxu0 0.0
      %1734 = vmatpush2.msra.mxu0 0.0
      %1735 = vmatprep.subr.mxu0 0.0
      %1736 = vmatpush2.msra.mxu0 0.0
      %1737 = vmatprep.subr.mxu0 0.0
      %1738 = vmatpush2.msra.mxu0 0.0
      %1739 = vmatprep.subr.mxu0 0.0
      %1740 = vmatpush2.msra.mxu0 0.0
      %1741 = vmatprep.subr.mxu0 0.0
      %1742 = vmatpush2.msra.mxu0 0.0
      %1743 = vmatprep.subr.mxu0 0.0
      %1744 = vmatpush2.msra.mxu0 0.0
      %1745 = vmatprep.subr.mxu0 0.0
      %1746 = vmatpush2.msra.mxu0 0.0
      %1747 = vmatprep.subr.mxu0 0.0
      %1748 = vmatpush2.msra.mxu0 0.0
      %1749 = vmatprep.subr.mxu0 0.0
      %1750 = vmatpush2.msra.mxu0 0.0
      %1751 = vmatprep.mubr.f32.mxu0 0.0
      %1752 = vmatmul.mubr.f32.gmra.mxu0 %v1685
      %v1753 = vpop.f32.mrf.mxu0
      %v1754 = vadd.f32 0.0, %v1753
      %v1755 = vpop.f32.mrf.mxu0
      %1756 = vdwg.mxu0
      %v1757 = vadd.f32 %v1679, %v1754
      %v1758 = vmax.f32 %v1757, 0.0
      %v1759 = vld [vmem:[%s14] sm:$0x7]
      %vm1760 = vcmask 23552
      %v1762 = vsel %vm1760, %v1758, 0
      %vm1764 = vcmask 1042432
      %v1766 = vsel %vm1764, %v1759, 0
      %1768 = vmatprep.subr.mxu0 0.0
      %1769 = vmatpush1.msra.mxu0 0.0
      %1770 = vmatprep.subr.mxu0 0.0
      %1771 = vmatpush1.msra.mxu0 0.0
      %1772 = vmatprep.subr.mxu0 0.0
      %1773 = vmatpush1.msra.mxu0 0.0
      %1774 = vmatprep.subr.mxu0 0.0
      %1775 = vmatpush1.msra.mxu0 0.0
      %1776 = vmatprep.subr.mxu0 0.0
      %1777 = vmatpush1.msra.mxu0 0.0
      %1778 = vmatprep.subr.mxu0 0.0
      %1779 = vmatpush1.msra.mxu0 0.0
      %1780 = vmatprep.subr.mxu0 0.0
      %1781 = vmatpush1.msra.mxu0 0.0
      %1782 = vmatprep.subr.mxu0 0.0
      %1783 = vmatpush1.msra.mxu0 0.0
      %1784 = vmatprep.subr.mxu0 0.0
      %1785 = vmatpush1.msra.mxu0 0.0
      %1786 = vmatprep.subr.mxu0 0.0
      %1787 = vmatpush1.msra.mxu0 0.0
      %1788 = vmatprep.subr.mxu0 0.0
      %1789 = vmatpush1.msra.mxu0 0.0
      %1790 = vmatprep.subr.mxu0 0.0
      %1791 = vmatpush1.msra.mxu0 0.0
      %1792 = vmatprep.subr.mxu0 0.0
      %1793 = vmatpush1.msra.mxu0 0.0
      %1794 = vmatprep.subr.mxu0 0.0
      %1795 = vmatpush1.msra.mxu0 0.0
      %1796 = vmatprep.subr.mxu0 0.0
      %1797 = vmatpush1.msra.mxu0 0.0
      %1798 = vmatprep.subr.mxu0 0.0
      %1799 = vmatpush1.msra.mxu0 %v1766
      %1800 = vmatprep.subr.mxu0 0.0
      %1801 = vmatpush2.msra.mxu0 0.0
      %1802 = vmatprep.subr.mxu0 0.0
      %1803 = vmatpush2.msra.mxu0 0.0
      %1804 = vmatprep.subr.mxu0 0.0
      %1805 = vmatpush2.msra.mxu0 0.0
      %1806 = vmatprep.subr.mxu0 0.0
      %1807 = vmatpush2.msra.mxu0 0.0
      %1808 = vmatprep.subr.mxu0 0.0
      %1809 = vmatpush2.msra.mxu0 0.0
      %1810 = vmatprep.subr.mxu0 0.0
      %1811 = vmatpush2.msra.mxu0 0.0
      %1812 = vmatprep.subr.mxu0 0.0
      %1813 = vmatpush2.msra.mxu0 0.0
      %1814 = vmatprep.subr.mxu0 0.0
      %1815 = vmatpush2.msra.mxu0 0.0
      %1816 = vmatprep.subr.mxu0 0.0
      %1817 = vmatpush2.msra.mxu0 0.0
      %1818 = vmatprep.subr.mxu0 0.0
      %1819 = vmatpush2.msra.mxu0 0.0
      %1820 = vmatprep.subr.mxu0 0.0
      %1821 = vmatpush2.msra.mxu0 0.0
      %1822 = vmatprep.subr.mxu0 0.0
      %1823 = vmatpush2.msra.mxu0 0.0
      %1824 = vmatprep.subr.mxu0 0.0
      %1825 = vmatpush2.msra.mxu0 0.0
      %1826 = vmatprep.subr.mxu0 0.0
      %1827 = vmatpush2.msra.mxu0 0.0
      %1828 = vmatprep.subr.mxu0 0.0
      %1829 = vmatpush2.msra.mxu0 0.0
      %1830 = vmatprep.subr.mxu0 0.0
      %1831 = vmatpush2.msra.mxu0 0.0
      %1832 = vmatprep.mubr.f32.mxu0 0.0
      %1833 = vmatmul.mubr.f32.gmra.mxu0 %v1762
      %v1834 = vpop.f32.mrf.mxu0
      %v1835 = vadd.f32 0.0, %v1834
      %v1836 = vpop.f32.mrf.mxu0
      %1837 = vdwg.mxu0
      %v1838 = vsub.f32 0.0, %v1835
      %v1839 = vmul.f32 %v1838, 1.442695
      %v1840 = vpow.pop %v1839
      %v1841 = vadd.f32 %v1840, 1.0
      %v1842 = vrcp.pop %v1841
      %v1843 = vlaneseq
      %v1844 = vshrl.u32 %v1843, 7
      %v1845 = vsub.s32 0, %v1844
      %v1846 = vrot.slane %v1842, %v1845
      %v1847 = vmul.f32 %v1450, %v1846
      %v1848 = vmul.f32 %v1451, %v1846
      %v1849 = vmul.f32 %v1452, %v1846
      %v1850 = vmul.f32 %v1453, %v1846
      %v1851 = vmul.f32 %v1454, %v1846
      %v1852 = vmul.f32 %v1455, %v1846
      %v1853 = vmul.f32 %v1456, %v1846
      %v1854 = vmul.f32 %v1457, %v1846
      %1855 = vst.msk [vmem:[%s534] sm:$0xff] %vm552, %v1847
      %1856 = vst.msk [vmem:[%s534 + $0x8] sm:$0xff] %vm552, %v1848
      %1857 = vst.msk [vmem:[%s534 + $0x10] sm:$0xff] %vm552, %v1849
      %1858 = vst.msk [vmem:[%s534 + $0x18] sm:$0xff] %vm552, %v1850
      %1859 = vst.msk [vmem:[%s534 + $0x20] sm:$0xff] %vm552, %v1851
      %1860 = vst.msk [vmem:[%s534 + $0x28] sm:$0xff] %vm552, %v1852
      %1861 = vst.msk [vmem:[%s534 + $0x30] sm:$0xff] %vm552, %v1853
      %1862 = vst.msk [vmem:[%s534 + $0x38] sm:$0xff] %vm552, %v1854
      %1864 = vrot.lane.b32.xlu0 %v1846, 112
      %v1865 = vpop.permute.xlu0 %1864
      %v1867 = vmul.f32 %v1442, %v1865
      %v1868 = vmul.f32 %v1443, %v1865
      %v1869 = vmul.f32 %v1444, %v1865
      %v1870 = vmul.f32 %v1445, %v1865
      %v1871 = vmul.f32 %v1446, %v1865
      %v1872 = vmul.f32 %v1447, %v1865
      %v1873 = vmul.f32 %v1448, %v1865
      %v1874 = vmul.f32 %v1449, %v1865
      %1883 = vrot.lane.b32.xlu0 %v1867, 16
      %v1884 = vpop.permute.xlu0 %1883
      %1885 = vrot.lane.b32.xlu0 %v1868, 16
      %v1886 = vpop.permute.xlu0 %1885
      %1887 = vrot.lane.b32.xlu0 %v1869, 16
      %v1888 = vpop.permute.xlu0 %1887
      %1889 = vrot.lane.b32.xlu0 %v1870, 16
      %v1890 = vpop.permute.xlu0 %1889
      %1891 = vrot.lane.b32.xlu0 %v1871, 16
      %v1892 = vpop.permute.xlu0 %1891
      %1893 = vrot.lane.b32.xlu0 %v1872, 16
      %v1894 = vpop.permute.xlu0 %1893
      %1895 = vrot.lane.b32.xlu0 %v1873, 16
      %v1896 = vpop.permute.xlu0 %1895
      %1897 = vrot.lane.b32.xlu0 %v1874, 16
      %v1898 = vpop.permute.xlu0 %1897
      %vm1907 = vcmask 261248
      %1908 = vst.msk [vmem:[%s534] sm:$0xff] %vm1907, %v1884
      %1909 = vst.msk [vmem:[%s534 + $0x8] sm:$0xff] %vm1907, %v1886
      %1910 = vst.msk [vmem:[%s534 + $0x10] sm:$0xff] %vm1907, %v1888
      %1911 = vst.msk [vmem:[%s534 + $0x18] sm:$0xff] %vm1907, %v1890
      %1912 = vst.msk [vmem:[%s534 + $0x20] sm:$0xff] %vm1907, %v1892
      %1913 = vst.msk [vmem:[%s534 + $0x28] sm:$0xff] %vm1907, %v1894
      %1914 = vst.msk [vmem:[%s534 + $0x30] sm:$0xff] %vm1907, %v1896
      %1915 = vst.msk [vmem:[%s534 + $0x38] sm:$0xff] %vm1907, %v1898
      %1916 = vrot.lane.b32.xlu0 %v1846, 96
      %v1917 = vpop.permute.xlu0 %1916
      %v1919 = vmul.f32 %v1458, %v1917
      %v1920 = vmul.f32 %v1459, %v1917
      %v1921 = vmul.f32 %v1460, %v1917
      %v1922 = vmul.f32 %v1461, %v1917
      %v1923 = vmul.f32 %v1462, %v1917
      %v1924 = vmul.f32 %v1463, %v1917
      %v1925 = vmul.f32 %v1464, %v1917
      %v1926 = vmul.f32 %v1465, %v1917
      %1935 = vrot.lane.b32.xlu0 %v1919, 32
      %v1936 = vpop.permute.xlu0 %1935
      %1937 = vrot.lane.b32.xlu0 %v1920, 32
      %v1938 = vpop.permute.xlu0 %1937
      %1939 = vrot.lane.b32.xlu0 %v1921, 32
      %v1940 = vpop.permute.xlu0 %1939
      %1941 = vrot.lane.b32.xlu0 %v1922, 32
      %v1942 = vpop.permute.xlu0 %1941
      %1943 = vrot.lane.b32.xlu0 %v1923, 32
      %v1944 = vpop.permute.xlu0 %1943
      %1945 = vrot.lane.b32.xlu0 %v1924, 32
      %v1946 = vpop.permute.xlu0 %1945
      %1947 = vrot.lane.b32.xlu0 %v1925, 32
      %v1948 = vpop.permute.xlu0 %1947
      %1949 = vrot.lane.b32.xlu0 %v1926, 32
      %v1950 = vpop.permute.xlu0 %1949
      %vm1959 = vcmask 392448
      %1960 = vst.msk [vmem:[%s534] sm:$0xff] %vm1959, %v1936
      %1961 = vst.msk [vmem:[%s534 + $0x8] sm:$0xff] %vm1959, %v1938
      %1962 = vst.msk [vmem:[%s534 + $0x10] sm:$0xff] %vm1959, %v1940
      %1963 = vst.msk [vmem:[%s534 + $0x18] sm:$0xff] %vm1959, %v1942
      %1964 = vst.msk [vmem:[%s534 + $0x20] sm:$0xff] %vm1959, %v1944
      %1965 = vst.msk [vmem:[%s534 + $0x28] sm:$0xff] %vm1959, %v1946
      %1966 = vst.msk [vmem:[%s534 + $0x30] sm:$0xff] %vm1959, %v1948
      %1967 = vst.msk [vmem:[%s534 + $0x38] sm:$0xff] %vm1959, %v1950
      %p1968 = scmp.lt.s32.totalorder %s26, 1
      %s1969 = scalar_select %p1968, %s26, 1
      %s1970 = smul.addr %s1969, 8
      %s1971 = smul.addr %s1970, 8
      %s1972 = scalar_lea.vmem %s15, %s1971
      // Predicated region
      $region81: #{tpu_custom_call.1} parent=79 // pred_check
        %p1973 = pneg %p374
      $region82: #{tpu_custom_call.1} parent=79 // pred_check_branch
        %1975 = sbr.rel (%p1973) target = $region84
      $region83: #{tpu_custom_call.1} parent=79 // pred_region
        _
      $region84: #{tpu_custom_call.1} parent=79 // pred_fallthru
        _
    $region80: #{tpu_custom_call.1} parent=5 // pred_fallthru
      _
    %p1976 = scmp.le.s32.totalorder 2, %s21
    // Predicated region
    $region85: #{tpu_custom_call.1} parent=5 // pred_check
      %p1977 = pneg %p1976
    $region86: #{tpu_custom_call.1} parent=5 // pred_check_branch
      %1979 = sbr.rel (%p1977) target = $region88
    $region87: #{tpu_custom_call.1} parent=5 // pred_region
      %s1980 = ssub.s32 %s21, 2
      // Predicated region
      $region89: #{tpu_custom_call.1} parent=87 // pred_check
        %p1981 = pneg %p380
      $region90: #{tpu_custom_call.1} parent=87 // pred_check_branch
        %1983 = sbr.rel (%p1981) target = $region92
      $region91: #{tpu_custom_call.1} parent=87 // pred_region
        %p1984 = scmp.lt.s32.totalorder %s27, 1
        %s1985 = scalar_select %p1984, %s27, 1
        %s1986 = smul.addr %s1985, 8
        %s1987 = smul.addr %s1986, 8
        %s1988 = scalar_lea.vmem %s15, %s1987
      $region92: #{tpu_custom_call.1} parent=87 // pred_fallthru
        _
    $region88: #{tpu_custom_call.1} parent=5 // pred_fallthru
      _
  $region6: #{tpu_custom_call.1} parent=0 // loop_footer
    %s25 = sadd.s32 1, %s21
  $region7: #{tpu_custom_call.1} parent=0 // loop_footer_branch
    %20 = sbr.rel target = $region3
  $region8: #{tpu_custom_call.1} parent=0 // loop_exit
    _

</llo_original>
